<compile_context>
chip_gen: v6e
topology: v6e:2x2x1
jax: 0.10.0
libtpu: 0.0.40
codegen_flags: <defaults>
</compile_context>

<pallas_src>
import functools

import numpy as np
import jax
import jax.numpy as jnp
from jax.experimental import pallas as pl
from jax.experimental.pallas import tpu as pltpu  # noqa: F401  (TPU backend)


# Architecture constants (fixed by the PyTorch module).
_K1, _S1, _C1 = 8, 4, 32
_K2, _S2, _C2 = 4, 2, 64
_K3, _S3, _C3 = 3, 1, 64
_FC1 = 512
_LANE = 128


def conv_out_dims(input_shape):
    _, H, W = input_shape
    h1, w1 = (H - _K1) // _S1 + 1, (W - _K1) // _S1 + 1
    h2, w2 = (h1 - _K2) // _S2 + 1, (w1 - _K2) // _S2 + 1
    h3, w3 = (h2 - _K3) // _S3 + 1, (w2 - _K3) // _S3 + 1
    return (h1, w1), (h2, w2), (h3, w3)


def conv_out_size(input_shape):
    (_, _), (_, _), (h3, w3) = conv_out_dims(input_shape)
    return _C3 * h3 * w3


# ---------------------------------------------------------------------------
# Fused Pallas kernel: whole DQN forward in one invocation (no grid).
# ---------------------------------------------------------------------------
def _dqn_fused_kernel(p1_ref, w1_ref, w2_ref, w3_ref, wf1_ref, wf2_ref, bias_ref,
                      o_ref, *, batch, input_shape, n_pad):
    B = batch
    (H1, W1), (H2, W2), (H3, W3) = conv_out_dims(input_shape)
    bf16 = jnp.bfloat16

    def mm(a, w):
        return jnp.dot(a, w, preferred_element_type=jnp.float32)

    # Biases: one lane-dense packed buffer (f32), one row per layer -> static slices.
    b1 = bias_ref[0:1, :_C1]
    b2 = bias_ref[1:2, :_C2]
    b3 = bias_ref[2:3, :_C3]
    bfc1 = bias_ref[3:4, :_FC1]
    bfc2 = bias_ref[4:5, :n_pad]

    # ---- conv1: ONE matmul over all (b, oh1, ow1) positions (M = B*H1*W1) --------
    # p1 rows are ordered (b, oh1, ow1); lanes are (kh, kw, cin) — matches w1 rows.
    a1 = jnp.maximum(mm(p1_ref[...], w1_ref[...]) + b1, 0.0)          # (B*H1*W1, 32) f32
    # Lane-preserving reshape: sublane 128 -> 8 (aligned), spatial moves to leading dims.
    a1 = a1.astype(bf16).reshape(B, H1, W1, _C1)                      # (B, H1, W1, 32)

    # ---- conv2: in-kernel im2col, spatial folded into M (ONE matmul) -------------
    # Stride-2 taps are built from unit-stride slices + concats on leading/sublane
    # axes only (no strided value slices, no per-pixel glue).
    pieces = []
    for kh in range(_K2):
        rows = jnp.concatenate(
            [a1[:, kh + _S2 * t: kh + _S2 * t + 1] for t in range(H2)],
            axis=1)                                                    # (B, H2, W1, 32)
        for kw in range(_K2):
            pieces.append(jnp.concatenate(
                [rows[:, :, kw + _S2 * t: kw + _S2 * t + 1, :] for t in range(W2)],
                axis=2))                                               # (B, H2, W2, 32)
    p2_4d = jnp.concatenate(pieces, axis=-1)                           # (B, H2, W2, 512)
    # Assemble the 2D patch matrix by sublane concat (rows ordered (b, oh2, ow2)).
    p2 = jnp.concatenate([p2_4d[b, i] for b in range(B) for i in range(H2)], axis=0)
    a2 = jnp.maximum(mm(p2, w2_ref[...]) + b2, 0.0).astype(bf16)       # (B*H2*W2, 64)

    # ---- conv3: in-kernel im2col (stride 1), ONE matmul --------------------------
    # a2 rows are (b, oh2, ow2); a conv3 patch row-block is built from contiguous
    # single/short row slices lane-concatenated in (kh, kw, cin) order.
    blocks = []
    for b in range(B):
        for oh3 in range(H3):
            blocks.append(jnp.concatenate(
                [a2[b * H2 * W2 + (oh3 + kh) * W2 + kw:
                    b * H2 * W2 + (oh3 + kh) * W2 + kw + W3, :]
                 for kh in range(_K3) for kw in range(_K3)], axis=-1)) # (W3, 9*64)
    p3 = blocks[0] if len(blocks) == 1 else jnp.concatenate(blocks, axis=0)
    a3 = jnp.maximum(mm(p3, w3_ref[...]) + b3, 0.0).astype(bf16)       # (B*H3*W3, 64)

    # ---- flatten (PyTorch NCHW .view(B,-1) handled via fc1 row permutation) ------
    if H3 * W3 == 1:
        flat = a3                                                      # (B, 64)
    else:
        flat = jnp.concatenate(
            [jnp.concatenate([a3[b * H3 * W3 + p: b * H3 * W3 + p + 1, :]
                              for p in range(H3 * W3)], axis=-1)
             for b in range(B)], axis=0)                               # (B, H3*W3*C3)

    # ---- fc1 + ReLU, fc2 (output padded to a lane-dense width) -------------------
    h = jnp.maximum(mm(flat, wf1_ref[...]) + bfc1, 0.0).astype(bf16)   # (B, 512)
    q = mm(h, wf2_ref[...]) + bfc2                                     # (B, n_pad) f32
    o_ref[...] = q.astype(o_ref.dtype)


def _full_spec(shape):
    n = len(shape)
    return pl.BlockSpec(shape, lambda *_, _n=n: (0,) * _n)


# ---------------------------------------------------------------------------
# Parameters: raw (PyTorch layout) + one-time relayout for the kernel.
# ---------------------------------------------------------------------------
def init_dqn_params(key, input_shape, n_actions):
    """Raw parameters in PyTorch layout: conv (OUT, Cin, KH, KW), fc (OUT, IN)."""
    C = input_shape[0]
    flat = conv_out_size(input_shape)
    ks = jax.random.split(key, 10)

    def w(k, shape, fan_in):
        return jax.random.normal(k, shape, jnp.float32) * (fan_in ** -0.5)

    return {
        "c1_w": w(ks[0], (_C1, C, _K1, _K1), C * _K1 * _K1),
        "c1_b": w(ks[1], (_C1,), C * _K1 * _K1),
        "c2_w": w(ks[2], (_C2, _C1, _K2, _K2), _C1 * _K2 * _K2),
        "c2_b": w(ks[3], (_C2,), _C1 * _K2 * _K2),
        "c3_w": w(ks[4], (_C3, _C2, _K3, _K3), _C2 * _K3 * _K3),
        "c3_b": w(ks[5], (_C3,), _C2 * _K3 * _K3),
        "fc1_w": w(ks[6], (_FC1, flat), flat),
        "fc1_b": w(ks[7], (_FC1,), flat),
        "fc2_w": w(ks[8], (n_actions, _FC1), _FC1),
        "fc2_b": w(ks[9], (n_actions,), _FC1),
    }


def prepare_params(raw, input_shape, n_actions):
    """One-time relayout of torch-layout weights into the kernel's matmul layout.
    Weights are stored bf16 (halves HBM->VMEM DMA); biases stay f32, packed into a
    single lane-dense buffer (fewer DMA descriptors, no masked partial-vreg loads)."""
    (_, _), (_, _), (h3, w3) = conv_out_dims(input_shape)
    bf16 = jnp.bfloat16

    def conv_w(w):
        out, cin, kh, kw = w.shape
        # (OUT, Cin, KH, KW) -> (KH, KW, Cin, OUT) -> (KH*KW*Cin, OUT)
        return jnp.transpose(w, (2, 3, 1, 0)).reshape(kh * kw * cin, out).astype(bf16)

    # fc1: permute rows from PyTorch's NCHW flatten order (c,h,w) to the kernel's
    # (h,w,c) order so .view(B,-1) semantics hold without runtime transposes.
    wf1 = raw["fc1_w"].reshape(_FC1, _C3, h3, w3)
    wf1 = jnp.transpose(wf1, (2, 3, 1, 0)).reshape(h3 * w3 * _C3, _FC1).astype(bf16)

    # fc2: transpose + zero-pad the output dim to a lane-dense multiple of 128.
    n_pad = ((n_actions + _LANE - 1) // _LANE) * _LANE
    wf2 = jnp.zeros((_FC1, n_pad), jnp.float32).at[:, :n_actions].set(
        raw["fc2_w"].T).astype(bf16)

    # Packed biases (f32): one layer per sublane row of a lane-dense buffer.
    bias_w = max(_FC1, n_pad)
    bias = jnp.zeros((8, bias_w), jnp.float32)
    bias = bias.at[0, :_C1].set(raw["c1_b"])
    bias = bias.at[1, :_C2].set(raw["c2_b"])
    bias = bias.at[2, :_C3].set(raw["c3_b"])
    bias = bias.at[3, :_FC1].set(raw["fc1_b"])
    bias = bias.at[4, :n_actions].set(raw["fc2_b"])

    return {"c1_w": conv_w(raw["c1_w"]), "c2_w": conv_w(raw["c2_w"]),
            "c3_w": conv_w(raw["c3_w"]), "fc1_w": wf1, "fc2_w": wf2, "bias": bias}


# ---------------------------------------------------------------------------
# Forward
# ---------------------------------------------------------------------------
@functools.partial(jax.jit, static_argnames=("n_actions",))
def dqn_forward(kparams, x, n_actions):
    """x: (B, C, H, W) float32 NCHW (same as PyTorch). Returns (B, n_actions) f32."""
    B, C, H, W = x.shape
    (H1, W1), _, _ = conv_out_dims((C, H, W))
    n_pad = kparams["fc2_w"].shape[1]

    # conv1 im2col in the wrapper (pure layout plumbing, done once per forward):
    # lane-dense (B*H1*W1, K1*K1*C) bf16 patch matrix, rows (b,oh,ow), lanes (kh,kw,c).
    xt = jnp.transpose(x, (0, 2, 3, 1)).astype(jnp.bfloat16)          # (B, H, W, C)
    cols = [xt[:, kh: kh + _S1 * (H1 - 1) + 1: _S1,
               kw: kw + _S1 * (W1 - 1) + 1: _S1, :]
            for kh in range(_K1) for kw in range(_K1)]
    p1 = jnp.concatenate(cols, axis=-1).reshape(B * H1 * W1, _K1 * _K1 * C)

    operands = (p1, kparams["c1_w"], kparams["c2_w"], kparams["c3_w"],
                kparams["fc1_w"], kparams["fc2_w"], kparams["bias"])
    # NOTE (v7x): at realistic RL batch sizes, add a grid over B and
    # compiler_params=pltpu.CompilerParams(dimension_semantics=("parallel",)) so the
    # work is sharded across both TensorCores; at B=2 the gridless form is best.
    q_pad = pl.pallas_call(
        functools.partial(_dqn_fused_kernel, batch=B, input_shape=(C, H, W),
                          n_pad=n_pad),
        out_shape=jax.ShapeDtypeStruct((B, n_pad), jnp.float32),
        in_specs=[_full_spec(op.shape) for op in operands],
        out_specs=_full_spec((B, n_pad)),
    )(*operands)
    return q_pad[:, :n_actions]


# Plain-JAX reference (PyTorch semantics) used for the numerical cross-check.
def dqn_reference(raw, x):
    def conv(h, w, b, s):
        y = jax.lax.conv_general_dilated(
            h, w, (s, s), "VALID", dimension_numbers=("NCHW", "OIHW", "NCHW"))
        return jax.nn.relu(y + b.reshape(1, -1, 1, 1))

    h = conv(x, raw["c1_w"], raw["c1_b"], _S1)
    h = conv(h, raw["c2_w"], raw["c2_b"], _S2)
    h = conv(h, raw["c3_w"], raw["c3_b"], _S3)
    h = h.reshape(x.shape[0], -1)                       # NCHW .view(B, -1)
    h = jax.nn.relu(h @ raw["fc1_w"].T + raw["fc1_b"])
    return h @ raw["fc2_w"].T + raw["fc2_b"]


if __name__ == "__main__":
    # input_shape=(4, 36, 36): conv spatial sizes 36 -> 8 -> 3 -> 1, conv_out_size = 64.
    input_shape = (4, 36, 36)
    n_actions = 4
    batch = 2

    key = jax.random.PRNGKey(0)
    k_params, k_x = jax.random.split(key)
    raw = init_dqn_params(k_params, input_shape, n_actions)
    kparams = prepare_params(raw, input_shape, n_actions)
    x = jax.random.normal(k_x, (batch,) + input_shape, jnp.float32)

    q = dqn_forward(kparams, x, n_actions=n_actions)
    q = jax.block_until_ready(q)
    assert q.shape == (batch, n_actions), q.shape
    assert q.dtype == jnp.float32

    # Loose tolerance: the kernel stores weights in bf16 (f32 accumulation on MXU).
    q_ref = dqn_reference(raw, x)
    np.testing.assert_allclose(np.asarray(q), np.asarray(q_ref), rtol=0.1, atol=0.1)

    print("KERNEL_OK")
</pallas_src>

<mosaic_0001>
module attributes {stable_mosaic.version = 11 : i64} {
  func.func @_dqn_fused_kernel(%arg0: memref<128x256xbf16, #tpu.memory_space<vmem>>, %arg1: memref<256x32xbf16, #tpu.memory_space<vmem>>, %arg2: memref<512x64xbf16, #tpu.memory_space<vmem>>, %arg3: memref<576x64xbf16, #tpu.memory_space<vmem>>, %arg4: memref<64x512xbf16, #tpu.memory_space<vmem>>, %arg5: memref<512x128xbf16, #tpu.memory_space<vmem>>, %arg6: memref<8x512xf32, #tpu.memory_space<vmem>>, %arg7: memref<2x128xf32, #tpu.memory_space<vmem>>) attributes {dimension_semantics = [], scalar_prefetch = 0 : i64, scratch_operands = 0 : i64, tpu.core_type = #tpu.core_type<tc>} {
    %c0 = arith.constant 0 : index
    %c0_0 = arith.constant 0 : index
    %0 = vector.load %arg6[%c0, %c0_0] : memref<8x512xf32, #tpu.memory_space<vmem>>, vector<1x32xf32>
    %c1 = arith.constant 1 : index
    %c0_1 = arith.constant 0 : index
    %1 = vector.load %arg6[%c1, %c0_1] : memref<8x512xf32, #tpu.memory_space<vmem>>, vector<1x64xf32>
    %c2 = arith.constant 2 : index
    %c0_2 = arith.constant 0 : index
    %2 = vector.load %arg6[%c2, %c0_2] : memref<8x512xf32, #tpu.memory_space<vmem>>, vector<1x64xf32>
    %c3 = arith.constant 3 : index
    %c0_3 = arith.constant 0 : index
    %3 = vector.load %arg6[%c3, %c0_3] : memref<8x512xf32, #tpu.memory_space<vmem>>, vector<1x512xf32>
    %c4 = arith.constant 4 : index
    %c0_4 = arith.constant 0 : index
    %4 = vector.load %arg6[%c4, %c0_4] : memref<8x512xf32, #tpu.memory_space<vmem>>, vector<1x128xf32>
    %c0_5 = arith.constant 0 : index
    %c0_6 = arith.constant 0 : index
    %5 = vector.load %arg0[%c0_5, %c0_6] : memref<128x256xbf16, #tpu.memory_space<vmem>>, vector<128x256xbf16>
    %c0_7 = arith.constant 0 : index
    %c0_8 = arith.constant 0 : index
    %6 = vector.load %arg1[%c0_7, %c0_8] : memref<256x32xbf16, #tpu.memory_space<vmem>>, vector<256x32xbf16>
    %cst = arith.constant dense<0.000000e+00> : vector<128x32xf32>
    %7 = tpu.matmul %5, %6, %cst {dimension_numbers = #tpu.dot_dimension_numbers<[1], [0], [0], [1], [0, 0, 1, 1], [], []>} : vector<128x256xbf16>, vector<256x32xbf16>, vector<128x32xf32> -> vector<128x32xf32>
    %8 = vector.broadcast %0 : vector<1x32xf32> to vector<128x32xf32>
    %9 = arith.addf %7, %8 : vector<128x32xf32>
    %cst_9 = arith.constant 0.000000e+00 : f32
    %10 = vector.broadcast %cst_9 : f32 to vector<128x32xf32>
    %11 = arith.maximumf %9, %10 : vector<128x32xf32>
    %12 = arith.truncf %11 : vector<128x32xf32> to vector<128x32xbf16>
    %13 = vector.shape_cast %12 : vector<128x32xbf16> to vector<2x8x8x32xbf16>
    %14 = vector.extract_strided_slice %13 {offsets = [0, 0, 0, 0], sizes = [2, 1, 8, 32], strides = [1, 1, 1, 1]} : vector<2x8x8x32xbf16> to vector<2x1x8x32xbf16>
    %15 = vector.extract_strided_slice %13 {offsets = [0, 2, 0, 0], sizes = [2, 1, 8, 32], strides = [1, 1, 1, 1]} : vector<2x8x8x32xbf16> to vector<2x1x8x32xbf16>
    %16 = vector.extract_strided_slice %13 {offsets = [0, 4, 0, 0], sizes = [2, 1, 8, 32], strides = [1, 1, 1, 1]} : vector<2x8x8x32xbf16> to vector<2x1x8x32xbf16>
    %17 = tpu.concatenate %14, %15, %16 in 1 : vector<2x1x8x32xbf16>, vector<2x1x8x32xbf16>, vector<2x1x8x32xbf16> -> vector<2x3x8x32xbf16>
    %18 = vector.extract_strided_slice %17 {offsets = [0, 0, 0, 0], sizes = [2, 3, 1, 32], strides = [1, 1, 1, 1]} : vector<2x3x8x32xbf16> to vector<2x3x1x32xbf16>
    %19 = vector.extract_strided_slice %17 {offsets = [0, 0, 2, 0], sizes = [2, 3, 1, 32], strides = [1, 1, 1, 1]} : vector<2x3x8x32xbf16> to vector<2x3x1x32xbf16>
    %20 = vector.extract_strided_slice %17 {offsets = [0, 0, 4, 0], sizes = [2, 3, 1, 32], strides = [1, 1, 1, 1]} : vector<2x3x8x32xbf16> to vector<2x3x1x32xbf16>
    %21 = tpu.concatenate %18, %19, %20 in 2 : vector<2x3x1x32xbf16>, vector<2x3x1x32xbf16>, vector<2x3x1x32xbf16> -> vector<2x3x3x32xbf16>
    %22 = vector.extract_strided_slice %17 {offsets = [0, 0, 1, 0], sizes = [2, 3, 1, 32], strides = [1, 1, 1, 1]} : vector<2x3x8x32xbf16> to vector<2x3x1x32xbf16>
    %23 = vector.extract_strided_slice %17 {offsets = [0, 0, 3, 0], sizes = [2, 3, 1, 32], strides = [1, 1, 1, 1]} : vector<2x3x8x32xbf16> to vector<2x3x1x32xbf16>
    %24 = vector.extract_strided_slice %17 {offsets = [0, 0, 5, 0], sizes = [2, 3, 1, 32], strides = [1, 1, 1, 1]} : vector<2x3x8x32xbf16> to vector<2x3x1x32xbf16>
    %25 = tpu.concatenate %22, %23, %24 in 2 : vector<2x3x1x32xbf16>, vector<2x3x1x32xbf16>, vector<2x3x1x32xbf16> -> vector<2x3x3x32xbf16>
    %26 = vector.extract_strided_slice %17 {offsets = [0, 0, 2, 0], sizes = [2, 3, 1, 32], strides = [1, 1, 1, 1]} : vector<2x3x8x32xbf16> to vector<2x3x1x32xbf16>
    %27 = vector.extract_strided_slice %17 {offsets = [0, 0, 4, 0], sizes = [2, 3, 1, 32], strides = [1, 1, 1, 1]} : vector<2x3x8x32xbf16> to vector<2x3x1x32xbf16>
    %28 = vector.extract_strided_slice %17 {offsets = [0, 0, 6, 0], sizes = [2, 3, 1, 32], strides = [1, 1, 1, 1]} : vector<2x3x8x32xbf16> to vector<2x3x1x32xbf16>
    %29 = tpu.concatenate %26, %27, %28 in 2 : vector<2x3x1x32xbf16>, vector<2x3x1x32xbf16>, vector<2x3x1x32xbf16> -> vector<2x3x3x32xbf16>
    %30 = vector.extract_strided_slice %17 {offsets = [0, 0, 3, 0], sizes = [2, 3, 1, 32], strides = [1, 1, 1, 1]} : vector<2x3x8x32xbf16> to vector<2x3x1x32xbf16>
    %31 = vector.extract_strided_slice %17 {offsets = [0, 0, 5, 0], sizes = [2, 3, 1, 32], strides = [1, 1, 1, 1]} : vector<2x3x8x32xbf16> to vector<2x3x1x32xbf16>
    %32 = vector.extract_strided_slice %17 {offsets = [0, 0, 7, 0], sizes = [2, 3, 1, 32], strides = [1, 1, 1, 1]} : vector<2x3x8x32xbf16> to vector<2x3x1x32xbf16>
    %33 = tpu.concatenate %30, %31, %32 in 2 : vector<2x3x1x32xbf16>, vector<2x3x1x32xbf16>, vector<2x3x1x32xbf16> -> vector<2x3x3x32xbf16>
    %34 = vector.extract_strided_slice %13 {offsets = [0, 1, 0, 0], sizes = [2, 1, 8, 32], strides = [1, 1, 1, 1]} : vector<2x8x8x32xbf16> to vector<2x1x8x32xbf16>
    %35 = vector.extract_strided_slice %13 {offsets = [0, 3, 0, 0], sizes = [2, 1, 8, 32], strides = [1, 1, 1, 1]} : vector<2x8x8x32xbf16> to vector<2x1x8x32xbf16>
    %36 = vector.extract_strided_slice %13 {offsets = [0, 5, 0, 0], sizes = [2, 1, 8, 32], strides = [1, 1, 1, 1]} : vector<2x8x8x32xbf16> to vector<2x1x8x32xbf16>
    %37 = tpu.concatenate %34, %35, %36 in 1 : vector<2x1x8x32xbf16>, vector<2x1x8x32xbf16>, vector<2x1x8x32xbf16> -> vector<2x3x8x32xbf16>
    %38 = vector.extract_strided_slice %37 {offsets = [0, 0, 0, 0], sizes = [2, 3, 1, 32], strides = [1, 1, 1, 1]} : vector<2x3x8x32xbf16> to vector<2x3x1x32xbf16>
    %39 = vector.extract_strided_slice %37 {offsets = [0, 0, 2, 0], sizes = [2, 3, 1, 32], strides = [1, 1, 1, 1]} : vector<2x3x8x32xbf16> to vector<2x3x1x32xbf16>
    %40 = vector.extract_strided_slice %37 {offsets = [0, 0, 4, 0], sizes = [2, 3, 1, 32], strides = [1, 1, 1, 1]} : vector<2x3x8x32xbf16> to vector<2x3x1x32xbf16>
    %41 = tpu.concatenate %38, %39, %40 in 2 : vector<2x3x1x32xbf16>, vector<2x3x1x32xbf16>, vector<2x3x1x32xbf16> -> vector<2x3x3x32xbf16>
    %42 = vector.extract_strided_slice %37 {offsets = [0, 0, 1, 0], sizes = [2, 3, 1, 32], strides = [1, 1, 1, 1]} : vector<2x3x8x32xbf16> to vector<2x3x1x32xbf16>
    %43 = vector.extract_strided_slice %37 {offsets = [0, 0, 3, 0], sizes = [2, 3, 1, 32], strides = [1, 1, 1, 1]} : vector<2x3x8x32xbf16> to vector<2x3x1x32xbf16>
    %44 = vector.extract_strided_slice %37 {offsets = [0, 0, 5, 0], sizes = [2, 3, 1, 32], strides = [1, 1, 1, 1]} : vector<2x3x8x32xbf16> to vector<2x3x1x32xbf16>
    %45 = tpu.concatenate %42, %43, %44 in 2 : vector<2x3x1x32xbf16>, vector<2x3x1x32xbf16>, vector<2x3x1x32xbf16> -> vector<2x3x3x32xbf16>
    %46 = vector.extract_strided_slice %37 {offsets = [0, 0, 2, 0], sizes = [2, 3, 1, 32], strides = [1, 1, 1, 1]} : vector<2x3x8x32xbf16> to vector<2x3x1x32xbf16>
    %47 = vector.extract_strided_slice %37 {offsets = [0, 0, 4, 0], sizes = [2, 3, 1, 32], strides = [1, 1, 1, 1]} : vector<2x3x8x32xbf16> to vector<2x3x1x32xbf16>
    %48 = vector.extract_strided_slice %37 {offsets = [0, 0, 6, 0], sizes = [2, 3, 1, 32], strides = [1, 1, 1, 1]} : vector<2x3x8x32xbf16> to vector<2x3x1x32xbf16>
    %49 = tpu.concatenate %46, %47, %48 in 2 : vector<2x3x1x32xbf16>, vector<2x3x1x32xbf16>, vector<2x3x1x32xbf16> -> vector<2x3x3x32xbf16>
    %50 = vector.extract_strided_slice %37 {offsets = [0, 0, 3, 0], sizes = [2, 3, 1, 32], strides = [1, 1, 1, 1]} : vector<2x3x8x32xbf16> to vector<2x3x1x32xbf16>
    %51 = vector.extract_strided_slice %37 {offsets = [0, 0, 5, 0], sizes = [2, 3, 1, 32], strides = [1, 1, 1, 1]} : vector<2x3x8x32xbf16> to vector<2x3x1x32xbf16>
    %52 = vector.extract_strided_slice %37 {offsets = [0, 0, 7, 0], sizes = [2, 3, 1, 32], strides = [1, 1, 1, 1]} : vector<2x3x8x32xbf16> to vector<2x3x1x32xbf16>
    %53 = tpu.concatenate %50, %51, %52 in 2 : vector<2x3x1x32xbf16>, vector<2x3x1x32xbf16>, vector<2x3x1x32xbf16> -> vector<2x3x3x32xbf16>
    %54 = vector.extract_strided_slice %13 {offsets = [0, 2, 0, 0], sizes = [2, 1, 8, 32], strides = [1, 1, 1, 1]} : vector<2x8x8x32xbf16> to vector<2x1x8x32xbf16>
    %55 = vector.extract_strided_slice %13 {offsets = [0, 4, 0, 0], sizes = [2, 1, 8, 32], strides = [1, 1, 1, 1]} : vector<2x8x8x32xbf16> to vector<2x1x8x32xbf16>
    %56 = vector.extract_strided_slice %13 {offsets = [0, 6, 0, 0], sizes = [2, 1, 8, 32], strides = [1, 1, 1, 1]} : vector<2x8x8x32xbf16> to vector<2x1x8x32xbf16>
    %57 = tpu.concatenate %54, %55, %56 in 1 : vector<2x1x8x32xbf16>, vector<2x1x8x32xbf16>, vector<2x1x8x32xbf16> -> vector<2x3x8x32xbf16>
    %58 = vector.extract_strided_slice %57 {offsets = [0, 0, 0, 0], sizes = [2, 3, 1, 32], strides = [1, 1, 1, 1]} : vector<2x3x8x32xbf16> to vector<2x3x1x32xbf16>
    %59 = vector.extract_strided_slice %57 {offsets = [0, 0, 2, 0], sizes = [2, 3, 1, 32], strides = [1, 1, 1, 1]} : vector<2x3x8x32xbf16> to vector<2x3x1x32xbf16>
    %60 = vector.extract_strided_slice %57 {offsets = [0, 0, 4, 0], sizes = [2, 3, 1, 32], strides = [1, 1, 1, 1]} : vector<2x3x8x32xbf16> to vector<2x3x1x32xbf16>
    %61 = tpu.concatenate %58, %59, %60 in 2 : vector<2x3x1x32xbf16>, vector<2x3x1x32xbf16>, vector<2x3x1x32xbf16> -> vector<2x3x3x32xbf16>
    %62 = vector.extract_strided_slice %57 {offsets = [0, 0, 1, 0], sizes = [2, 3, 1, 32], strides = [1, 1, 1, 1]} : vector<2x3x8x32xbf16> to vector<2x3x1x32xbf16>
    %63 = vector.extract_strided_slice %57 {offsets = [0, 0, 3, 0], sizes = [2, 3, 1, 32], strides = [1, 1, 1, 1]} : vector<2x3x8x32xbf16> to vector<2x3x1x32xbf16>
    %64 = vector.extract_strided_slice %57 {offsets = [0, 0, 5, 0], sizes = [2, 3, 1, 32], strides = [1, 1, 1, 1]} : vector<2x3x8x32xbf16> to vector<2x3x1x32xbf16>
    %65 = tpu.concatenate %62, %63, %64 in 2 : vector<2x3x1x32xbf16>, vector<2x3x1x32xbf16>, vector<2x3x1x32xbf16> -> vector<2x3x3x32xbf16>
    %66 = vector.extract_strided_slice %57 {offsets = [0, 0, 2, 0], sizes = [2, 3, 1, 32], strides = [1, 1, 1, 1]} : vector<2x3x8x32xbf16> to vector<2x3x1x32xbf16>
    %67 = vector.extract_strided_slice %57 {offsets = [0, 0, 4, 0], sizes = [2, 3, 1, 32], strides = [1, 1, 1, 1]} : vector<2x3x8x32xbf16> to vector<2x3x1x32xbf16>
    %68 = vector.extract_strided_slice %57 {offsets = [0, 0, 6, 0], sizes = [2, 3, 1, 32], strides = [1, 1, 1, 1]} : vector<2x3x8x32xbf16> to vector<2x3x1x32xbf16>
    %69 = tpu.concatenate %66, %67, %68 in 2 : vector<2x3x1x32xbf16>, vector<2x3x1x32xbf16>, vector<2x3x1x32xbf16> -> vector<2x3x3x32xbf16>
    %70 = vector.extract_strided_slice %57 {offsets = [0, 0, 3, 0], sizes = [2, 3, 1, 32], strides = [1, 1, 1, 1]} : vector<2x3x8x32xbf16> to vector<2x3x1x32xbf16>
    %71 = vector.extract_strided_slice %57 {offsets = [0, 0, 5, 0], sizes = [2, 3, 1, 32], strides = [1, 1, 1, 1]} : vector<2x3x8x32xbf16> to vector<2x3x1x32xbf16>
    %72 = vector.extract_strided_slice %57 {offsets = [0, 0, 7, 0], sizes = [2, 3, 1, 32], strides = [1, 1, 1, 1]} : vector<2x3x8x32xbf16> to vector<2x3x1x32xbf16>
    %73 = tpu.concatenate %70, %71, %72 in 2 : vector<2x3x1x32xbf16>, vector<2x3x1x32xbf16>, vector<2x3x1x32xbf16> -> vector<2x3x3x32xbf16>
    %74 = vector.extract_strided_slice %13 {offsets = [0, 3, 0, 0], sizes = [2, 1, 8, 32], strides = [1, 1, 1, 1]} : vector<2x8x8x32xbf16> to vector<2x1x8x32xbf16>
    %75 = vector.extract_strided_slice %13 {offsets = [0, 5, 0, 0], sizes = [2, 1, 8, 32], strides = [1, 1, 1, 1]} : vector<2x8x8x32xbf16> to vector<2x1x8x32xbf16>
    %76 = vector.extract_strided_slice %13 {offsets = [0, 7, 0, 0], sizes = [2, 1, 8, 32], strides = [1, 1, 1, 1]} : vector<2x8x8x32xbf16> to vector<2x1x8x32xbf16>
    %77 = tpu.concatenate %74, %75, %76 in 1 : vector<2x1x8x32xbf16>, vector<2x1x8x32xbf16>, vector<2x1x8x32xbf16> -> vector<2x3x8x32xbf16>
    %78 = vector.extract_strided_slice %77 {offsets = [0, 0, 0, 0], sizes = [2, 3, 1, 32], strides = [1, 1, 1, 1]} : vector<2x3x8x32xbf16> to vector<2x3x1x32xbf16>
    %79 = vector.extract_strided_slice %77 {offsets = [0, 0, 2, 0], sizes = [2, 3, 1, 32], strides = [1, 1, 1, 1]} : vector<2x3x8x32xbf16> to vector<2x3x1x32xbf16>
    %80 = vector.extract_strided_slice %77 {offsets = [0, 0, 4, 0], sizes = [2, 3, 1, 32], strides = [1, 1, 1, 1]} : vector<2x3x8x32xbf16> to vector<2x3x1x32xbf16>
    %81 = tpu.concatenate %78, %79, %80 in 2 : vector<2x3x1x32xbf16>, vector<2x3x1x32xbf16>, vector<2x3x1x32xbf16> -> vector<2x3x3x32xbf16>
    %82 = vector.extract_strided_slice %77 {offsets = [0, 0, 1, 0], sizes = [2, 3, 1, 32], strides = [1, 1, 1, 1]} : vector<2x3x8x32xbf16> to vector<2x3x1x32xbf16>
    %83 = vector.extract_strided_slice %77 {offsets = [0, 0, 3, 0], sizes = [2, 3, 1, 32], strides = [1, 1, 1, 1]} : vector<2x3x8x32xbf16> to vector<2x3x1x32xbf16>
    %84 = vector.extract_strided_slice %77 {offsets = [0, 0, 5, 0], sizes = [2, 3, 1, 32], strides = [1, 1, 1, 1]} : vector<2x3x8x32xbf16> to vector<2x3x1x32xbf16>
    %85 = tpu.concatenate %82, %83, %84 in 2 : vector<2x3x1x32xbf16>, vector<2x3x1x32xbf16>, vector<2x3x1x32xbf16> -> vector<2x3x3x32xbf16>
    %86 = vector.extract_strided_slice %77 {offsets = [0, 0, 2, 0], sizes = [2, 3, 1, 32], strides = [1, 1, 1, 1]} : vector<2x3x8x32xbf16> to vector<2x3x1x32xbf16>
    %87 = vector.extract_strided_slice %77 {offsets = [0, 0, 4, 0], sizes = [2, 3, 1, 32], strides = [1, 1, 1, 1]} : vector<2x3x8x32xbf16> to vector<2x3x1x32xbf16>
    %88 = vector.extract_strided_slice %77 {offsets = [0, 0, 6, 0], sizes = [2, 3, 1, 32], strides = [1, 1, 1, 1]} : vector<2x3x8x32xbf16> to vector<2x3x1x32xbf16>
    %89 = tpu.concatenate %86, %87, %88 in 2 : vector<2x3x1x32xbf16>, vector<2x3x1x32xbf16>, vector<2x3x1x32xbf16> -> vector<2x3x3x32xbf16>
    %90 = vector.extract_strided_slice %77 {offsets = [0, 0, 3, 0], sizes = [2, 3, 1, 32], strides = [1, 1, 1, 1]} : vector<2x3x8x32xbf16> to vector<2x3x1x32xbf16>
    %91 = vector.extract_strided_slice %77 {offsets = [0, 0, 5, 0], sizes = [2, 3, 1, 32], strides = [1, 1, 1, 1]} : vector<2x3x8x32xbf16> to vector<2x3x1x32xbf16>
    %92 = vector.extract_strided_slice %77 {offsets = [0, 0, 7, 0], sizes = [2, 3, 1, 32], strides = [1, 1, 1, 1]} : vector<2x3x8x32xbf16> to vector<2x3x1x32xbf16>
    %93 = tpu.concatenate %90, %91, %92 in 2 : vector<2x3x1x32xbf16>, vector<2x3x1x32xbf16>, vector<2x3x1x32xbf16> -> vector<2x3x3x32xbf16>
    %94 = tpu.concatenate %21, %25, %29, %33, %41, %45, %49, %53, %61, %65, %69, %73, %81, %85, %89, %93 in 3 : vector<2x3x3x32xbf16>, vector<2x3x3x32xbf16>, vector<2x3x3x32xbf16>, vector<2x3x3x32xbf16>, vector<2x3x3x32xbf16>, vector<2x3x3x32xbf16>, vector<2x3x3x32xbf16>, vector<2x3x3x32xbf16>, vector<2x3x3x32xbf16>, vector<2x3x3x32xbf16>, vector<2x3x3x32xbf16>, vector<2x3x3x32xbf16>, vector<2x3x3x32xbf16>, vector<2x3x3x32xbf16>, vector<2x3x3x32xbf16>, vector<2x3x3x32xbf16> -> vector<2x3x3x512xbf16>
    %95 = vector.extract_strided_slice %94 {offsets = [0, 0, 0, 0], sizes = [1, 1, 3, 512], strides = [1, 1, 1, 1]} : vector<2x3x3x512xbf16> to vector<1x1x3x512xbf16>
    %96 = vector.shape_cast %95 : vector<1x1x3x512xbf16> to vector<3x512xbf16>
    %97 = vector.extract_strided_slice %94 {offsets = [0, 1, 0, 0], sizes = [1, 1, 3, 512], strides = [1, 1, 1, 1]} : vector<2x3x3x512xbf16> to vector<1x1x3x512xbf16>
    %98 = vector.shape_cast %97 : vector<1x1x3x512xbf16> to vector<3x512xbf16>
    %99 = vector.extract_strided_slice %94 {offsets = [0, 2, 0, 0], sizes = [1, 1, 3, 512], strides = [1, 1, 1, 1]} : vector<2x3x3x512xbf16> to vector<1x1x3x512xbf16>
    %100 = vector.shape_cast %99 : vector<1x1x3x512xbf16> to vector<3x512xbf16>
    %101 = vector.extract_strided_slice %94 {offsets = [1, 0, 0, 0], sizes = [1, 1, 3, 512], strides = [1, 1, 1, 1]} : vector<2x3x3x512xbf16> to vector<1x1x3x512xbf16>
    %102 = vector.shape_cast %101 : vector<1x1x3x512xbf16> to vector<3x512xbf16>
    %103 = vector.extract_strided_slice %94 {offsets = [1, 1, 0, 0], sizes = [1, 1, 3, 512], strides = [1, 1, 1, 1]} : vector<2x3x3x512xbf16> to vector<1x1x3x512xbf16>
    %104 = vector.shape_cast %103 : vector<1x1x3x512xbf16> to vector<3x512xbf16>
    %105 = vector.extract_strided_slice %94 {offsets = [1, 2, 0, 0], sizes = [1, 1, 3, 512], strides = [1, 1, 1, 1]} : vector<2x3x3x512xbf16> to vector<1x1x3x512xbf16>
    %106 = vector.shape_cast %105 : vector<1x1x3x512xbf16> to vector<3x512xbf16>
    %107 = tpu.concatenate %96, %98, %100, %102, %104, %106 in 0 : vector<3x512xbf16>, vector<3x512xbf16>, vector<3x512xbf16>, vector<3x512xbf16>, vector<3x512xbf16>, vector<3x512xbf16> -> vector<18x512xbf16>
    %c0_10 = arith.constant 0 : index
    %c0_11 = arith.constant 0 : index
    %108 = vector.load %arg2[%c0_10, %c0_11] : memref<512x64xbf16, #tpu.memory_space<vmem>>, vector<512x64xbf16>
    %cst_12 = arith.constant dense<0.000000e+00> : vector<18x64xf32>
    %109 = tpu.matmul %107, %108, %cst_12 {dimension_numbers = #tpu.dot_dimension_numbers<[1], [0], [0], [1], [0, 0, 1, 1], [], []>} : vector<18x512xbf16>, vector<512x64xbf16>, vector<18x64xf32> -> vector<18x64xf32>
    %110 = vector.broadcast %1 : vector<1x64xf32> to vector<18x64xf32>
    %111 = arith.addf %109, %110 : vector<18x64xf32>
    %cst_13 = arith.constant 0.000000e+00 : f32
    %112 = vector.broadcast %cst_13 : f32 to vector<18x64xf32>
    %113 = arith.maximumf %111, %112 : vector<18x64xf32>
    %114 = arith.truncf %113 : vector<18x64xf32> to vector<18x64xbf16>
    %115 = vector.extract_strided_slice %114 {offsets = [0, 0], sizes = [1, 64], strides = [1, 1]} : vector<18x64xbf16> to vector<1x64xbf16>
    %116 = vector.extract_strided_slice %114 {offsets = [1, 0], sizes = [1, 64], strides = [1, 1]} : vector<18x64xbf16> to vector<1x64xbf16>
    %117 = vector.extract_strided_slice %114 {offsets = [2, 0], sizes = [1, 64], strides = [1, 1]} : vector<18x64xbf16> to vector<1x64xbf16>
    %118 = vector.extract_strided_slice %114 {offsets = [3, 0], sizes = [1, 64], strides = [1, 1]} : vector<18x64xbf16> to vector<1x64xbf16>
    %119 = vector.extract_strided_slice %114 {offsets = [4, 0], sizes = [1, 64], strides = [1, 1]} : vector<18x64xbf16> to vector<1x64xbf16>
    %120 = vector.extract_strided_slice %114 {offsets = [5, 0], sizes = [1, 64], strides = [1, 1]} : vector<18x64xbf16> to vector<1x64xbf16>
    %121 = vector.extract_strided_slice %114 {offsets = [6, 0], sizes = [1, 64], strides = [1, 1]} : vector<18x64xbf16> to vector<1x64xbf16>
    %122 = vector.extract_strided_slice %114 {offsets = [7, 0], sizes = [1, 64], strides = [1, 1]} : vector<18x64xbf16> to vector<1x64xbf16>
    %123 = vector.extract_strided_slice %114 {offsets = [8, 0], sizes = [1, 64], strides = [1, 1]} : vector<18x64xbf16> to vector<1x64xbf16>
    %124 = tpu.concatenate %115, %116, %117, %118, %119, %120, %121, %122, %123 in 1 : vector<1x64xbf16>, vector<1x64xbf16>, vector<1x64xbf16>, vector<1x64xbf16>, vector<1x64xbf16>, vector<1x64xbf16>, vector<1x64xbf16>, vector<1x64xbf16>, vector<1x64xbf16> -> vector<1x576xbf16>
    %125 = vector.extract_strided_slice %114 {offsets = [9, 0], sizes = [1, 64], strides = [1, 1]} : vector<18x64xbf16> to vector<1x64xbf16>
    %126 = vector.extract_strided_slice %114 {offsets = [10, 0], sizes = [1, 64], strides = [1, 1]} : vector<18x64xbf16> to vector<1x64xbf16>
    %127 = vector.extract_strided_slice %114 {offsets = [11, 0], sizes = [1, 64], strides = [1, 1]} : vector<18x64xbf16> to vector<1x64xbf16>
    %128 = vector.extract_strided_slice %114 {offsets = [12, 0], sizes = [1, 64], strides = [1, 1]} : vector<18x64xbf16> to vector<1x64xbf16>
    %129 = vector.extract_strided_slice %114 {offsets = [13, 0], sizes = [1, 64], strides = [1, 1]} : vector<18x64xbf16> to vector<1x64xbf16>
    %130 = vector.extract_strided_slice %114 {offsets = [14, 0], sizes = [1, 64], strides = [1, 1]} : vector<18x64xbf16> to vector<1x64xbf16>
    %131 = vector.extract_strided_slice %114 {offsets = [15, 0], sizes = [1, 64], strides = [1, 1]} : vector<18x64xbf16> to vector<1x64xbf16>
    %132 = vector.extract_strided_slice %114 {offsets = [16, 0], sizes = [1, 64], strides = [1, 1]} : vector<18x64xbf16> to vector<1x64xbf16>
    %133 = vector.extract_strided_slice %114 {offsets = [17, 0], sizes = [1, 64], strides = [1, 1]} : vector<18x64xbf16> to vector<1x64xbf16>
    %134 = tpu.concatenate %125, %126, %127, %128, %129, %130, %131, %132, %133 in 1 : vector<1x64xbf16>, vector<1x64xbf16>, vector<1x64xbf16>, vector<1x64xbf16>, vector<1x64xbf16>, vector<1x64xbf16>, vector<1x64xbf16>, vector<1x64xbf16>, vector<1x64xbf16> -> vector<1x576xbf16>
    %135 = tpu.concatenate %124, %134 in 0 : vector<1x576xbf16>, vector<1x576xbf16> -> vector<2x576xbf16>
    %c0_14 = arith.constant 0 : index
    %c0_15 = arith.constant 0 : index
    %136 = vector.load %arg3[%c0_14, %c0_15] : memref<576x64xbf16, #tpu.memory_space<vmem>>, vector<576x64xbf16>
    %cst_16 = arith.constant dense<0.000000e+00> : vector<2x64xf32>
    %137 = tpu.matmul %135, %136, %cst_16 {dimension_numbers = #tpu.dot_dimension_numbers<[1], [0], [0], [1], [0, 0, 1, 1], [], []>} : vector<2x576xbf16>, vector<576x64xbf16>, vector<2x64xf32> -> vector<2x64xf32>
    %138 = vector.broadcast %2 : vector<1x64xf32> to vector<2x64xf32>
    %139 = arith.addf %137, %138 : vector<2x64xf32>
    %cst_17 = arith.constant 0.000000e+00 : f32
    %140 = vector.broadcast %cst_17 : f32 to vector<2x64xf32>
    %141 = arith.maximumf %139, %140 : vector<2x64xf32>
    %142 = arith.truncf %141 : vector<2x64xf32> to vector<2x64xbf16>
    %c0_18 = arith.constant 0 : index
    %c0_19 = arith.constant 0 : index
    %143 = vector.load %arg4[%c0_18, %c0_19] : memref<64x512xbf16, #tpu.memory_space<vmem>>, vector<64x512xbf16>
    %cst_20 = arith.constant dense<0.000000e+00> : vector<2x512xf32>
    %144 = tpu.matmul %142, %143, %cst_20 {dimension_numbers = #tpu.dot_dimension_numbers<[1], [0], [0], [1], [0, 0, 1, 1], [], []>} : vector<2x64xbf16>, vector<64x512xbf16>, vector<2x512xf32> -> vector<2x512xf32>
    %145 = vector.broadcast %3 : vector<1x512xf32> to vector<2x512xf32>
    %146 = arith.addf %144, %145 : vector<2x512xf32>
    %cst_21 = arith.constant 0.000000e+00 : f32
    %147 = vector.broadcast %cst_21 : f32 to vector<2x512xf32>
    %148 = arith.maximumf %146, %147 : vector<2x512xf32>
    %149 = arith.truncf %148 : vector<2x512xf32> to vector<2x512xbf16>
    %c0_22 = arith.constant 0 : index
    %c0_23 = arith.constant 0 : index
    %150 = vector.load %arg5[%c0_22, %c0_23] : memref<512x128xbf16, #tpu.memory_space<vmem>>, vector<512x128xbf16>
    %cst_24 = arith.constant dense<0.000000e+00> : vector<2x128xf32>
    %151 = tpu.matmul %149, %150, %cst_24 {dimension_numbers = #tpu.dot_dimension_numbers<[1], [0], [0], [1], [0, 0, 1, 1], [], []>} : vector<2x512xbf16>, vector<512x128xbf16>, vector<2x128xf32> -> vector<2x128xf32>
    %152 = vector.broadcast %4 : vector<1x128xf32> to vector<2x128xf32>
    %153 = arith.addf %151, %152 : vector<2x128xf32>
    %c0_25 = arith.constant 0 : index
    %c0_26 = arith.constant 0 : index
    %154 = vector.load %arg7[%c0_25, %c0_26] : memref<2x128xf32, #tpu.memory_space<vmem>>, vector<2x128xf32>
    tpu.vector_store %arg7[%c0_25, %c0_26], %153 {strides = array<i32>} : memref<2x128xf32, #tpu.memory_space<vmem>>, vector<2x128xf32>,
    return
  }
}

</mosaic_0001>

<llo_original>
// kernel: dqn_forward.1
$region0: #{dqn_forward.1}
  #allocation0 [shape = 'u32[]', space=smem, size = 0x4, offset = 0x4, fixed_abs, tag = 'smem constant byte address 0x4 - core index']
  #allocation1 [shape = 'u32[144,128]{1,0:T(1,128)}', space=vmem, size = 0x12000, scoped, tag = 'internal scratch']
  %s0 = inlined_call_operand.vmem [shape: bf16[128,256], index: 0, kind: input, shape index: {}]
  %s1 = inlined_call_operand.vmem [shape: bf16[256,32], index: 1, kind: input, shape index: {}]
  %s2 = inlined_call_operand.vmem [shape: bf16[512,64], index: 2, kind: input, shape index: {}]
  %s3 = inlined_call_operand.vmem [shape: bf16[576,64], index: 3, kind: input, shape index: {}]
  %s4 = inlined_call_operand.vmem [shape: bf16[64,512], index: 4, kind: input, shape index: {}]
  %s5 = inlined_call_operand.vmem [shape: bf16[512,128], index: 5, kind: input, shape index: {}]
  %s6 = inlined_call_operand.vmem [shape: f32[8,512], index: 6, kind: input, shape index: {}]
  %s7 = inlined_call_operand.hbm [shape: f32[2,128], index: 7, kind: output, shape index: {}]
  %s8 = sld [smem:[#allocation0]]
  $region38: #{dqn_forward.1} parent=0
    _
  %s10 = ssub.s32 1, %s8
  %s11 = scalar_select 0, %s10, %s8
  $region1: #{dqn_forward.1} parent=0
    #allocation2 [shape = 'u8[1024]{0}', space=vmem, size = 0x400, scoped, tag = 'output window, operand 0, single buffered']
    #allocation3 [shape = 's32[1]{0}', space=sflag, size = 0x4, scoped, tag = 'scoped memory for dqn_forward.1']
    %12 = vsyncpa [#allocation3], 0
    // Predicated region
    $region2: #{dqn_forward.1} parent=1 // pred_check
      _
    $region3: #{dqn_forward.1} parent=1 // pred_check_branch
      %14 = sbr.rel (0) target = $region5
    $region4: #{dqn_forward.1} parent=1 // pred_region
      _
    $region5: #{dqn_forward.1} parent=1 // pred_fallthru
      _
    // Predicated region
    $region6: #{dqn_forward.1} parent=1 // pred_check
      _
    $region7: #{dqn_forward.1} parent=1 // pred_check_branch
      %16 = sbr.rel (0) target = $region9
    $region8: #{dqn_forward.1} parent=1 // pred_region
      _
    $region9: #{dqn_forward.1} parent=1 // pred_fallthru
      _
    // Predicated region
    $region10: #{dqn_forward.1} parent=1 // pred_check
      _
    $region11: #{dqn_forward.1} parent=1 // pred_check_branch
      %18 = sbr.rel (0) target = $region13
    $region12: #{dqn_forward.1} parent=1 // pred_region
      _
    $region13: #{dqn_forward.1} parent=1 // pred_fallthru
      _
    // Predicated region
    $region14: #{dqn_forward.1} parent=1 // pred_check
      _
    $region15: #{dqn_forward.1} parent=1 // pred_check_branch
      %20 = sbr.rel (0) target = $region17
    $region16: #{dqn_forward.1} parent=1 // pred_region
      _
    $region17: #{dqn_forward.1} parent=1 // pred_fallthru
      _
    // Predicated region
    $region18: #{dqn_forward.1} parent=1 // pred_check
      _
    $region19: #{dqn_forward.1} parent=1 // pred_check_branch
      %22 = sbr.rel (0) target = $region21
    $region20: #{dqn_forward.1} parent=1 // pred_region
      _
    $region21: #{dqn_forward.1} parent=1 // pred_fallthru
      _
    // Predicated region
    $region22: #{dqn_forward.1} parent=1 // pred_check
      _
    $region23: #{dqn_forward.1} parent=1 // pred_check_branch
      %24 = sbr.rel (0) target = $region25
    $region24: #{dqn_forward.1} parent=1 // pred_region
      _
    $region25: #{dqn_forward.1} parent=1 // pred_fallthru
      _
    // Predicated region
    $region26: #{dqn_forward.1} parent=1 // pred_check
      _
    $region27: #{dqn_forward.1} parent=1 // pred_check_branch
      %26 = sbr.rel (0) target = $region29
    $region28: #{dqn_forward.1} parent=1 // pred_region
      _
    $region29: #{dqn_forward.1} parent=1 // pred_fallthru
      _
    %v28 = vld [vmem:[%s6] ss:$0 sm:$0xff]
    %v29 = vld [vmem:[%s6 + $0x1] ss:$0 sm:$0xff]
    %v30 = vld [vmem:[%s6 + $0x2] ss:$0 sm:$0xff]
    %s31 = scalar_lea.vmem %s6, 3
    %v32 = vld [vmem:[%s31] ss:$8 sm:$0xf]
    %v33 = vld [vmem:[%s6 + $0x4] ss:$0 sm:$0xff]
    %v34 = vld [vmem:[%s0] sm:$0xff]
    %v35 = vld [vmem:[%s0 + $0x8] sm:$0xff]
    %v36 = vld [vmem:[%s0 + $0x10] sm:$0xff]
    %v37 = vld [vmem:[%s0 + $0x18] sm:$0xff]
    %v38 = vld [vmem:[%s0 + $0x20] sm:$0xff]
    %v39 = vld [vmem:[%s0 + $0x28] sm:$0xff]
    %v40 = vld [vmem:[%s0 + $0x30] sm:$0xff]
    %v41 = vld [vmem:[%s0 + $0x38] sm:$0xff]
    %v42 = vld [vmem:[%s0 + $0x40] sm:$0xff]
    %v43 = vld [vmem:[%s0 + $0x48] sm:$0xff]
    %v44 = vld [vmem:[%s0 + $0x50] sm:$0xff]
    %v45 = vld [vmem:[%s0 + $0x58] sm:$0xff]
    %v46 = vld [vmem:[%s0 + $0x60] sm:$0xff]
    %v47 = vld [vmem:[%s0 + $0x68] sm:$0xff]
    %v48 = vld [vmem:[%s0 + $0x70] sm:$0xff]
    %v49 = vld [vmem:[%s0 + $0x78] sm:$0xff]
    %v50 = vld [vmem:[%s1] sm:$0xf]
    %v51 = vld [vmem:[%s1 + $0x4] sm:$0xf]
    %v52 = vld [vmem:[%s1 + $0x8] sm:$0xf]
    %v53 = vld [vmem:[%s1 + $0xc] sm:$0xf]
    %v54 = vld [vmem:[%s1 + $0x10] sm:$0xf]
    %v55 = vld [vmem:[%s1 + $0x14] sm:$0xf]
    %v56 = vld [vmem:[%s1 + $0x18] sm:$0xf]
    %v57 = vld [vmem:[%s1 + $0x1c] sm:$0xf]
    %v58 = vld [vmem:[%s1 + $0x20] sm:$0xf]
    %v59 = vld [vmem:[%s1 + $0x24] sm:$0xf]
    %v60 = vld [vmem:[%s1 + $0x28] sm:$0xf]
    %v61 = vld [vmem:[%s1 + $0x2c] sm:$0xf]
    %v62 = vld [vmem:[%s1 + $0x30] sm:$0xf]
    %v63 = vld [vmem:[%s1 + $0x34] sm:$0xf]
    %v64 = vld [vmem:[%s1 + $0x38] sm:$0xf]
    %v65 = vld [vmem:[%s1 + $0x3c] sm:$0xf]
    %v66 = vld [vmem:[%s1 + $0x40] sm:$0xf]
    %v67 = vld [vmem:[%s1 + $0x44] sm:$0xf]
    %v68 = vld [vmem:[%s1 + $0x48] sm:$0xf]
    %v69 = vld [vmem:[%s1 + $0x4c] sm:$0xf]
    %v70 = vld [vmem:[%s1 + $0x50] sm:$0xf]
    %v71 = vld [vmem:[%s1 + $0x54] sm:$0xf]
    %v72 = vld [vmem:[%s1 + $0x58] sm:$0xf]
    %v73 = vld [vmem:[%s1 + $0x5c] sm:$0xf]
    %v74 = vld [vmem:[%s1 + $0x60] sm:$0xf]
    %v75 = vld [vmem:[%s1 + $0x64] sm:$0xf]
    %v76 = vld [vmem:[%s1 + $0x68] sm:$0xf]
    %v77 = vld [vmem:[%s1 + $0x6c] sm:$0xf]
    %v78 = vld [vmem:[%s1 + $0x70] sm:$0xf]
    %v79 = vld [vmem:[%s1 + $0x74] sm:$0xf]
    %v80 = vld [vmem:[%s1 + $0x78] sm:$0xf]
    %v81 = vld [vmem:[%s1 + $0x7c] sm:$0xf]
    %v98 = vunpack.c.l.b16 %v34
    %v99 = vunpack.c.h.b16 %v34
    %v100 = vunpack.c.l.b16 %v35
    %v101 = vunpack.c.h.b16 %v35
    %v102 = vunpack.c.l.b16 %v36
    %v103 = vunpack.c.h.b16 %v36
    %v104 = vunpack.c.l.b16 %v37
    %v105 = vunpack.c.h.b16 %v37
    %v106 = vunpack.c.l.b16 %v38
    %v107 = vunpack.c.h.b16 %v38
    %v108 = vunpack.c.l.b16 %v39
    %v109 = vunpack.c.h.b16 %v39
    %v110 = vunpack.c.l.b16 %v40
    %v111 = vunpack.c.h.b16 %v40
    %v112 = vunpack.c.l.b16 %v41
    %v113 = vunpack.c.h.b16 %v41
    %v114 = vunpack.c.l.b16 %v42
    %v115 = vunpack.c.h.b16 %v42
    %v116 = vunpack.c.l.b16 %v43
    %v117 = vunpack.c.h.b16 %v43
    %v118 = vunpack.c.l.b16 %v44
    %v119 = vunpack.c.h.b16 %v44
    %v120 = vunpack.c.l.b16 %v45
    %v121 = vunpack.c.h.b16 %v45
    %v122 = vunpack.c.l.b16 %v46
    %v123 = vunpack.c.h.b16 %v46
    %v124 = vunpack.c.l.b16 %v47
    %v125 = vunpack.c.h.b16 %v47
    %v126 = vunpack.c.l.b16 %v48
    %v127 = vunpack.c.h.b16 %v48
    %v128 = vunpack.c.l.b16 %v49
    %v129 = vunpack.c.h.b16 %v49
    %v130 = vpack.c.b16 %v100, %v98
    %v131 = vpack.c.b16 %v101, %v99
    %v132 = vpack.c.b16 %v104, %v102
    %v133 = vpack.c.b16 %v105, %v103
    %v134 = vpack.c.b16 %v108, %v106
    %v135 = vpack.c.b16 %v109, %v107
    %v136 = vpack.c.b16 %v112, %v110
    %v137 = vpack.c.b16 %v113, %v111
    %v138 = vpack.c.b16 %v116, %v114
    %v139 = vpack.c.b16 %v117, %v115
    %v140 = vpack.c.b16 %v120, %v118
    %v141 = vpack.c.b16 %v121, %v119
    %v142 = vpack.c.b16 %v124, %v122
    %v143 = vpack.c.b16 %v125, %v123
    %v144 = vpack.c.b16 %v128, %v126
    %v145 = vpack.c.b16 %v129, %v127
    %v194 = vunpack.c.l.b16 %v50
    %v195 = vunpack.c.l.b16 %v51
    %v196 = vunpack.c.l.b16 %v52
    %v197 = vunpack.c.l.b16 %v53
    %v198 = vunpack.c.l.b16 %v54
    %v199 = vunpack.c.l.b16 %v55
    %v200 = vunpack.c.l.b16 %v56
    %v201 = vunpack.c.l.b16 %v57
    %v202 = vunpack.c.l.b16 %v58
    %v203 = vunpack.c.l.b16 %v59
    %v204 = vunpack.c.l.b16 %v60
    %v205 = vunpack.c.l.b16 %v61
    %v206 = vunpack.c.l.b16 %v62
    %v207 = vunpack.c.l.b16 %v63
    %v208 = vunpack.c.l.b16 %v64
    %v209 = vunpack.c.l.b16 %v65
    %v210 = vunpack.c.l.b16 %v66
    %v211 = vunpack.c.l.b16 %v67
    %v212 = vunpack.c.l.b16 %v68
    %v213 = vunpack.c.l.b16 %v69
    %v214 = vunpack.c.l.b16 %v70
    %v215 = vunpack.c.l.b16 %v71
    %v216 = vunpack.c.l.b16 %v72
    %v217 = vunpack.c.l.b16 %v73
    %v218 = vunpack.c.l.b16 %v74
    %v219 = vunpack.c.l.b16 %v75
    %v220 = vunpack.c.l.b16 %v76
    %v221 = vunpack.c.l.b16 %v77
    %v222 = vunpack.c.l.b16 %v78
    %v223 = vunpack.c.l.b16 %v79
    %v224 = vunpack.c.l.b16 %v80
    %v225 = vunpack.c.l.b16 %v81
    %v226 = vpack.c.b16 %v195, %v194
    %v227 = vpack.c.b16 %v197, %v196
    %v228 = vpack.c.b16 %v199, %v198
    %v229 = vpack.c.b16 %v201, %v200
    %v230 = vpack.c.b16 %v203, %v202
    %v231 = vpack.c.b16 %v205, %v204
    %v232 = vpack.c.b16 %v207, %v206
    %v233 = vpack.c.b16 %v209, %v208
    %v234 = vpack.c.b16 %v211, %v210
    %v235 = vpack.c.b16 %v213, %v212
    %v236 = vpack.c.b16 %v215, %v214
    %v237 = vpack.c.b16 %v217, %v216
    %v238 = vpack.c.b16 %v219, %v218
    %v239 = vpack.c.b16 %v221, %v220
    %v240 = vpack.c.b16 %v223, %v222
    %v241 = vpack.c.b16 %v225, %v224
    %258 = vmatprep.subr.bf16.mxu0 0
    %259 = vmatpush1.bf16.msra.mxu0 %v233
    %260 = vmatprep.subr.bf16.mxu0 0
    %261 = vmatpush1.bf16.msra.mxu0 %v232
    %262 = vmatprep.subr.bf16.mxu0 0
    %263 = vmatpush1.bf16.msra.mxu0 %v231
    %264 = vmatprep.subr.bf16.mxu0 0
    %265 = vmatpush1.bf16.msra.mxu0 %v230
    %266 = vmatprep.subr.bf16.mxu0 0
    %267 = vmatpush1.bf16.msra.mxu0 %v229
    %268 = vmatprep.subr.bf16.mxu0 0
    %269 = vmatpush1.bf16.msra.mxu0 %v228
    %270 = vmatprep.subr.bf16.mxu0 0
    %271 = vmatpush1.bf16.msra.mxu0 %v227
    %272 = vmatprep.subr.bf16.mxu0 0
    %273 = vmatpush1.bf16.msra.mxu0 %v226
    %274 = vmatprep.subr.bf16.mxu0 0
    %275 = vmatpush2.bf16.msra.mxu0 %v241
    %276 = vmatprep.subr.bf16.mxu0 0
    %277 = vmatpush2.bf16.msra.mxu0 %v240
    %278 = vmatprep.subr.bf16.mxu0 0
    %279 = vmatpush2.bf16.msra.mxu0 %v239
    %280 = vmatprep.subr.bf16.mxu0 0
    %281 = vmatpush2.bf16.msra.mxu0 %v238
    %282 = vmatprep.subr.bf16.mxu0 0
    %283 = vmatpush2.bf16.msra.mxu0 %v237
    %284 = vmatprep.subr.bf16.mxu0 0
    %285 = vmatpush2.bf16.msra.mxu0 %v236
    %286 = vmatprep.subr.bf16.mxu0 0
    %287 = vmatpush2.bf16.msra.mxu0 %v235
    %288 = vmatprep.subr.bf16.mxu0 0
    %289 = vmatpush2.bf16.msra.mxu0 %v234
    %290 = vmatprep.mubr.bf16.mxu0 %v131
    %291 = vmatmul.mubr.bf16.gmra.mxu0 %v130
    %v292 = vpop.f32.mrf.mxu0
    %v293 = vadd.f32 %v28, %v292
    %v294 = vpop.f32.mrf.mxu0
    %v295 = vpop.f32.mrf.mxu0
    %v296 = vadd.f32 %v28, %v295
    %v297 = vpop.f32.mrf.mxu0
    %298 = vmatprep.mubr.bf16.mxu0 %v133
    %299 = vmatmul.mubr.bf16.gmra.mxu0 %v132
    %v300 = vpop.f32.mrf.mxu0
    %v301 = vadd.f32 %v28, %v300
    %v302 = vpop.f32.mrf.mxu0
    %v303 = vpop.f32.mrf.mxu0
    %v304 = vadd.f32 %v28, %v303
    %v305 = vpop.f32.mrf.mxu0
    %306 = vmatprep.mubr.bf16.mxu0 %v135
    %307 = vmatmul.mubr.bf16.gmra.mxu0 %v134
    %v308 = vpop.f32.mrf.mxu0
    %v309 = vadd.f32 %v28, %v308
    %v310 = vpop.f32.mrf.mxu0
    %v311 = vpop.f32.mrf.mxu0
    %v312 = vadd.f32 %v28, %v311
    %v313 = vpop.f32.mrf.mxu0
    %314 = vmatprep.mubr.bf16.mxu0 %v137
    %315 = vmatmul.mubr.bf16.gmra.mxu0 %v136
    %v316 = vpop.f32.mrf.mxu0
    %v317 = vadd.f32 %v28, %v316
    %v318 = vpop.f32.mrf.mxu0
    %v319 = vpop.f32.mrf.mxu0
    %v320 = vadd.f32 %v28, %v319
    %v321 = vpop.f32.mrf.mxu0
    %322 = vmatprep.mubr.bf16.mxu0 %v139
    %323 = vmatmul.mubr.bf16.gmra.mxu0 %v138
    %v324 = vpop.f32.mrf.mxu0
    %v325 = vadd.f32 %v28, %v324
    %v326 = vpop.f32.mrf.mxu0
    %v327 = vpop.f32.mrf.mxu0
    %v328 = vadd.f32 %v28, %v327
    %v329 = vpop.f32.mrf.mxu0
    %330 = vmatprep.mubr.bf16.mxu0 %v141
    %331 = vmatmul.mubr.bf16.gmra.mxu0 %v140
    %v332 = vpop.f32.mrf.mxu0
    %v333 = vadd.f32 %v28, %v332
    %v334 = vpop.f32.mrf.mxu0
    %v335 = vpop.f32.mrf.mxu0
    %v336 = vadd.f32 %v28, %v335
    %v337 = vpop.f32.mrf.mxu0
    %338 = vmatprep.mubr.bf16.mxu0 %v143
    %339 = vmatmul.mubr.bf16.gmra.mxu0 %v142
    %v340 = vpop.f32.mrf.mxu0
    %v341 = vadd.f32 %v28, %v340
    %v342 = vpop.f32.mrf.mxu0
    %v343 = vpop.f32.mrf.mxu0
    %v344 = vadd.f32 %v28, %v343
    %v345 = vpop.f32.mrf.mxu0
    %346 = vmatprep.mubr.bf16.mxu0 %v145
    %347 = vmatmul.mubr.bf16.gmra.mxu0 %v144
    %v348 = vpop.f32.mrf.mxu0
    %v349 = vadd.f32 %v28, %v348
    %v350 = vpop.f32.mrf.mxu0
    %v351 = vpop.f32.mrf.mxu0
    %v352 = vadd.f32 %v28, %v351
    %v353 = vpop.f32.mrf.mxu0
    %354 = vdwg.mxu0
    %v355 = vmax.f32 %v293, 0.0
    %v356 = vmax.f32 %v296, 0.0
    %v357 = vmax.f32 %v301, 0.0
    %v358 = vmax.f32 %v304, 0.0
    %v359 = vmax.f32 %v309, 0.0
    %v360 = vmax.f32 %v312, 0.0
    %v361 = vmax.f32 %v317, 0.0
    %v362 = vmax.f32 %v320, 0.0
    %v363 = vmax.f32 %v325, 0.0
    %v364 = vmax.f32 %v328, 0.0
    %v365 = vmax.f32 %v333, 0.0
    %v366 = vmax.f32 %v336, 0.0
    %v367 = vmax.f32 %v341, 0.0
    %v368 = vmax.f32 %v344, 0.0
    %v369 = vmax.f32 %v349, 0.0
    %v370 = vmax.f32 %v352, 0.0
    %v371 = vpack.c.bf16 %v356, %v355
    %v372 = vpack.c.bf16 %v358, %v357
    %v373 = vpack.c.bf16 %v360, %v359
    %v374 = vpack.c.bf16 %v362, %v361
    %v375 = vpack.c.bf16 %v364, %v363
    %v376 = vpack.c.bf16 %v366, %v365
    %v377 = vpack.c.bf16 %v368, %v367
    %v378 = vpack.c.bf16 %v370, %v369
    %v387 = vunpack.c.l.b16 %v371
    %v388 = vunpack.c.h.b16 %v371
    %v389 = vunpack.c.l.b16 %v372
    %v390 = vunpack.c.h.b16 %v372
    %v391 = vunpack.c.l.b16 %v373
    %v392 = vunpack.c.h.b16 %v373
    %v393 = vunpack.c.l.b16 %v374
    %v394 = vunpack.c.h.b16 %v374
    %v395 = vunpack.c.l.b16 %v375
    %v396 = vunpack.c.h.b16 %v375
    %v397 = vunpack.c.l.b16 %v376
    %v398 = vunpack.c.h.b16 %v376
    %v399 = vunpack.c.l.b16 %v377
    %v400 = vunpack.c.h.b16 %v377
    %v401 = vunpack.c.l.b16 %v378
    %v402 = vunpack.c.h.b16 %v378
    %v403 = vpack.c.b16 %v387, %v387
    %v404 = vpack.c.b16 %v388, %v388
    %v405 = vpack.c.b16 %v389, %v389
    %v406 = vpack.c.b16 %v390, %v390
    %v407 = vpack.c.b16 %v391, %v391
    %v408 = vpack.c.b16 %v392, %v392
    %v409 = vpack.c.b16 %v393, %v393
    %v410 = vpack.c.b16 %v394, %v394
    %v411 = vpack.c.b16 %v395, %v395
    %v412 = vpack.c.b16 %v396, %v396
    %v413 = vpack.c.b16 %v397, %v397
    %v414 = vpack.c.b16 %v398, %v398
    %v415 = vpack.c.b16 %v399, %v399
    %v416 = vpack.c.b16 %v400, %v400
    %v417 = vpack.c.b16 %v401, %v401
    %v418 = vpack.c.b16 %v402, %v402
    %v436 = vshll.u32 %v403, 16
    %v438 = vrot.slane %v436, 1
    %v440 = vshll.u32 %v405, 16
    %v442 = vrot.slane %v440, 1
    %v444 = vshll.u32 %v407, 16
    %v446 = vrot.slane %v444, 1
    %v448 = vshll.u32 %v411, 16
    %v450 = vrot.slane %v448, 1
    %v452 = vshll.u32 %v413, 16
    %v454 = vrot.slane %v452, 1
    %v456 = vshll.u32 %v415, 16
    %v458 = vrot.slane %v456, 1
    %v465 = vrot.slane %v403, 1
    %v466 = vrot.slane %v405, 1
    %v467 = vrot.slane %v407, 1
    %v468 = vrot.slane %v411, 1
    %v469 = vrot.slane %v413, 1
    %v470 = vrot.slane %v415, 1
    %vm471 = vcmask 1040384
    %vm472 = vsmask.f32 256
    %vm473 = vmand %vm471, %vm472
    %v474 = vsel %vm473, %v403, %v438
    %v475 = vsel %vm473, %v405, %v442
    %v476 = vsel %vm473, %v407, %v446
    %v477 = vsel %vm473, %v411, %v450
    %v478 = vsel %vm473, %v413, %v454
    %v479 = vsel %vm473, %v415, %v458
    %vm480 = vcmask 1040384
    %v483 = vsel %vm480, %v474, %v465
    %v486 = vsel %vm480, %v475, %v466
    %v489 = vsel %vm480, %v476, %v467
    %v492 = vsel %vm480, %v477, %v468
    %v495 = vsel %vm480, %v478, %v469
    %v498 = vsel %vm480, %v479, %v470
    %v499 = vshrl.u32 %v403, 16
    %v501 = vshrl.u32 %v405, 16
    %v503 = vshrl.u32 %v407, 16
    %v505 = vshrl.u32 %v411, 16
    %v507 = vshrl.u32 %v413, 16
    %v509 = vshrl.u32 %v415, 16
    %v523 = vrot.slane %v499, 1
    %v524 = vrot.slane %v501, 1
    %v525 = vrot.slane %v503, 1
    %v526 = vrot.slane %v505, 1
    %v527 = vrot.slane %v507, 1
    %v528 = vrot.slane %v509, 1
    %v529 = vsel %vm473, %v499, %v465
    %v530 = vsel %vm473, %v501, %v466
    %v531 = vsel %vm473, %v503, %v467
    %v532 = vsel %vm473, %v505, %v468
    %v533 = vsel %vm473, %v507, %v469
    %v534 = vsel %vm473, %v509, %v470
    %v537 = vsel %vm480, %v529, %v523
    %v540 = vsel %vm480, %v530, %v524
    %v543 = vsel %vm480, %v531, %v525
    %v546 = vsel %vm480, %v532, %v526
    %v549 = vsel %vm480, %v533, %v527
    %v552 = vsel %vm480, %v534, %v528
    %v553 = vrot.slane %v436, 2
    %v554 = vrot.slane %v440, 2
    %v555 = vrot.slane %v444, 2
    %v556 = vrot.slane %v448, 2
    %v557 = vrot.slane %v452, 2
    %v558 = vrot.slane %v456, 2
    %v565 = vrot.slane %v403, 2
    %v566 = vrot.slane %v405, 2
    %v567 = vrot.slane %v407, 2
    %v568 = vrot.slane %v411, 2
    %v569 = vrot.slane %v413, 2
    %v570 = vrot.slane %v415, 2
    %v571 = vsel %vm473, %v465, %v553
    %v572 = vsel %vm473, %v466, %v554
    %v573 = vsel %vm473, %v467, %v555
    %v574 = vsel %vm473, %v468, %v556
    %v575 = vsel %vm473, %v469, %v557
    %v576 = vsel %vm473, %v470, %v558
    %v579 = vsel %vm480, %v571, %v565
    %v582 = vsel %vm480, %v572, %v566
    %v585 = vsel %vm480, %v573, %v567
    %v588 = vsel %vm480, %v574, %v568
    %v591 = vsel %vm480, %v575, %v569
    %v594 = vsel %vm480, %v576, %v570
    %v607 = vrot.slane %v499, 2
    %v608 = vrot.slane %v501, 2
    %v609 = vrot.slane %v503, 2
    %v610 = vrot.slane %v505, 2
    %v611 = vrot.slane %v507, 2
    %v612 = vrot.slane %v509, 2
    %v613 = vsel %vm473, %v523, %v565
    %v614 = vsel %vm473, %v524, %v566
    %v615 = vsel %vm473, %v525, %v567
    %v616 = vsel %vm473, %v526, %v568
    %v617 = vsel %vm473, %v527, %v569
    %v618 = vsel %vm473, %v528, %v570
    %v621 = vsel %vm480, %v613, %v607
    %v624 = vsel %vm480, %v614, %v608
    %v627 = vsel %vm480, %v615, %v609
    %v630 = vsel %vm480, %v616, %v610
    %v633 = vsel %vm480, %v617, %v611
    %v636 = vsel %vm480, %v618, %v612
    %v638 = vshll.u32 %v404, 16
    %v640 = vrot.slane %v638, 1
    %v642 = vshll.u32 %v406, 16
    %v644 = vrot.slane %v642, 1
    %v646 = vshll.u32 %v408, 16
    %v648 = vrot.slane %v646, 1
    %v650 = vshll.u32 %v412, 16
    %v652 = vrot.slane %v650, 1
    %v654 = vshll.u32 %v414, 16
    %v656 = vrot.slane %v654, 1
    %v658 = vshll.u32 %v416, 16
    %v660 = vrot.slane %v658, 1
    %v667 = vrot.slane %v404, 1
    %v668 = vrot.slane %v406, 1
    %v669 = vrot.slane %v408, 1
    %v670 = vrot.slane %v412, 1
    %v671 = vrot.slane %v414, 1
    %v672 = vrot.slane %v416, 1
    %v673 = vsel %vm473, %v404, %v640
    %v674 = vsel %vm473, %v406, %v644
    %v675 = vsel %vm473, %v408, %v648
    %v676 = vsel %vm473, %v412, %v652
    %v677 = vsel %vm473, %v414, %v656
    %v678 = vsel %vm473, %v416, %v660
    %v681 = vsel %vm480, %v673, %v667
    %v684 = vsel %vm480, %v674, %v668
    %v687 = vsel %vm480, %v675, %v669
    %v690 = vsel %vm480, %v676, %v670
    %v693 = vsel %vm480, %v677, %v671
    %v696 = vsel %vm480, %v678, %v672
    %v697 = vshrl.u32 %v404, 16
    %v699 = vshrl.u32 %v406, 16
    %v701 = vshrl.u32 %v408, 16
    %v703 = vshrl.u32 %v412, 16
    %v705 = vshrl.u32 %v414, 16
    %v707 = vshrl.u32 %v416, 16
    %v721 = vrot.slane %v697, 1
    %v722 = vrot.slane %v699, 1
    %v723 = vrot.slane %v701, 1
    %v724 = vrot.slane %v703, 1
    %v725 = vrot.slane %v705, 1
    %v726 = vrot.slane %v707, 1
    %v727 = vsel %vm473, %v697, %v667
    %v728 = vsel %vm473, %v699, %v668
    %v729 = vsel %vm473, %v701, %v669
    %v730 = vsel %vm473, %v703, %v670
    %v731 = vsel %vm473, %v705, %v671
    %v732 = vsel %vm473, %v707, %v672
    %v735 = vsel %vm480, %v727, %v721
    %v738 = vsel %vm480, %v728, %v722
    %v741 = vsel %vm480, %v729, %v723
    %v744 = vsel %vm480, %v730, %v724
    %v747 = vsel %vm480, %v731, %v725
    %v750 = vsel %vm480, %v732, %v726
    %v751 = vrot.slane %v638, 2
    %v752 = vrot.slane %v642, 2
    %v753 = vrot.slane %v646, 2
    %v754 = vrot.slane %v650, 2
    %v755 = vrot.slane %v654, 2
    %v756 = vrot.slane %v658, 2
    %v763 = vrot.slane %v404, 2
    %v764 = vrot.slane %v406, 2
    %v765 = vrot.slane %v408, 2
    %v766 = vrot.slane %v412, 2
    %v767 = vrot.slane %v414, 2
    %v768 = vrot.slane %v416, 2
    %v769 = vsel %vm473, %v667, %v751
    %v770 = vsel %vm473, %v668, %v752
    %v771 = vsel %vm473, %v669, %v753
    %v772 = vsel %vm473, %v670, %v754
    %v773 = vsel %vm473, %v671, %v755
    %v774 = vsel %vm473, %v672, %v756
    %v777 = vsel %vm480, %v769, %v763
    %v780 = vsel %vm480, %v770, %v764
    %v783 = vsel %vm480, %v771, %v765
    %v786 = vsel %vm480, %v772, %v766
    %v789 = vsel %vm480, %v773, %v767
    %v792 = vsel %vm480, %v774, %v768
    %v805 = vrot.slane %v697, 2
    %v806 = vrot.slane %v699, 2
    %v807 = vrot.slane %v701, 2
    %v808 = vrot.slane %v703, 2
    %v809 = vrot.slane %v705, 2
    %v810 = vrot.slane %v707, 2
    %v811 = vsel %vm473, %v721, %v763
    %v812 = vsel %vm473, %v722, %v764
    %v813 = vsel %vm473, %v723, %v765
    %v814 = vsel %vm473, %v724, %v766
    %v815 = vsel %vm473, %v725, %v767
    %v816 = vsel %vm473, %v726, %v768
    %v819 = vsel %vm480, %v811, %v805
    %v822 = vsel %vm480, %v812, %v806
    %v825 = vsel %vm480, %v813, %v807
    %v828 = vsel %vm480, %v814, %v808
    %v831 = vsel %vm480, %v815, %v809
    %v834 = vsel %vm480, %v816, %v810
    %v836 = vshll.u32 %v409, 16
    %v838 = vrot.slane %v836, 1
    %v840 = vshll.u32 %v417, 16
    %v842 = vrot.slane %v840, 1
    %v845 = vrot.slane %v409, 1
    %v846 = vrot.slane %v417, 1
    %v847 = vsel %vm473, %v409, %v838
    %v848 = vsel %vm473, %v417, %v842
    %v851 = vsel %vm480, %v847, %v845
    %v854 = vsel %vm480, %v848, %v846
    %v855 = vshrl.u32 %v409, 16
    %v857 = vshrl.u32 %v417, 16
    %v863 = vrot.slane %v855, 1
    %v864 = vrot.slane %v857, 1
    %v865 = vsel %vm473, %v855, %v845
    %v866 = vsel %vm473, %v857, %v846
    %v869 = vsel %vm480, %v865, %v863
    %v872 = vsel %vm480, %v866, %v864
    %v873 = vrot.slane %v836, 2
    %v874 = vrot.slane %v840, 2
    %v877 = vrot.slane %v409, 2
    %v878 = vrot.slane %v417, 2
    %v879 = vsel %vm473, %v845, %v873
    %v880 = vsel %vm473, %v846, %v874
    %v883 = vsel %vm480, %v879, %v877
    %v886 = vsel %vm480, %v880, %v878
    %v891 = vrot.slane %v855, 2
    %v892 = vrot.slane %v857, 2
    %v893 = vsel %vm473, %v863, %v877
    %v894 = vsel %vm473, %v864, %v878
    %v897 = vsel %vm480, %v893, %v891
    %v900 = vsel %vm480, %v894, %v892
    %v902 = vshll.u32 %v410, 16
    %v904 = vrot.slane %v902, 1
    %v906 = vshll.u32 %v418, 16
    %v908 = vrot.slane %v906, 1
    %v911 = vrot.slane %v410, 1
    %v912 = vrot.slane %v418, 1
    %v913 = vsel %vm473, %v410, %v904
    %v914 = vsel %vm473, %v418, %v908
    %v917 = vsel %vm480, %v913, %v911
    %v920 = vsel %vm480, %v914, %v912
    %v921 = vshrl.u32 %v410, 16
    %v923 = vshrl.u32 %v418, 16
    %v929 = vrot.slane %v921, 1
    %v930 = vrot.slane %v923, 1
    %v931 = vsel %vm473, %v921, %v911
    %v932 = vsel %vm473, %v923, %v912
    %v935 = vsel %vm480, %v931, %v929
    %v938 = vsel %vm480, %v932, %v930
    %v939 = vrot.slane %v902, 2
    %v940 = vrot.slane %v906, 2
    %v943 = vrot.slane %v410, 2
    %v944 = vrot.slane %v418, 2
    %v945 = vsel %vm473, %v911, %v939
    %v946 = vsel %vm473, %v912, %v940
    %v949 = vsel %vm480, %v945, %v943
    %v952 = vsel %vm480, %v946, %v944
    %v957 = vrot.slane %v921, 2
    %v958 = vrot.slane %v923, 2
    %v959 = vsel %vm473, %v929, %v943
    %v960 = vsel %vm473, %v930, %v944
    %v963 = vsel %vm480, %v959, %v957
    %v966 = vsel %vm480, %v960, %v958
    %973 = vrot.lane.b32.xlu0 %v537, 32
    %v974 = vpop.permute.xlu0 %973
    %975 = vrot.lane.b32.xlu0 %v540, 32
    %v976 = vpop.permute.xlu0 %975
    %977 = vrot.lane.b32.xlu0 %v543, 32
    %v978 = vpop.permute.xlu0 %977
    %979 = vrot.lane.b32.xlu0 %v546, 32
    %v980 = vpop.permute.xlu0 %979
    %981 = vrot.lane.b32.xlu0 %v549, 32
    %v982 = vpop.permute.xlu0 %981
    %983 = vrot.lane.b32.xlu0 %v552, 32
    %v984 = vpop.permute.xlu0 %983
    %991 = vrot.lane.b32.xlu0 %v579, 64
    %v992 = vpop.permute.xlu0 %991
    %993 = vrot.lane.b32.xlu0 %v582, 64
    %v994 = vpop.permute.xlu0 %993
    %995 = vrot.lane.b32.xlu0 %v585, 64
    %v996 = vpop.permute.xlu0 %995
    %997 = vrot.lane.b32.xlu0 %v588, 64
    %v998 = vpop.permute.xlu0 %997
    %999 = vrot.lane.b32.xlu0 %v591, 64
    %v1000 = vpop.permute.xlu0 %999
    %1001 = vrot.lane.b32.xlu0 %v594, 64
    %v1002 = vpop.permute.xlu0 %1001
    %1009 = vrot.lane.b32.xlu0 %v621, 96
    %v1010 = vpop.permute.xlu0 %1009
    %1011 = vrot.lane.b32.xlu0 %v624, 96
    %v1012 = vpop.permute.xlu0 %1011
    %1013 = vrot.lane.b32.xlu0 %v627, 96
    %v1014 = vpop.permute.xlu0 %1013
    %1015 = vrot.lane.b32.xlu0 %v630, 96
    %v1016 = vpop.permute.xlu0 %1015
    %1017 = vrot.lane.b32.xlu0 %v633, 96
    %v1018 = vpop.permute.xlu0 %1017
    %1019 = vrot.lane.b32.xlu0 %v636, 96
    %v1020 = vpop.permute.xlu0 %1019
    %1027 = vrot.lane.b32.xlu0 %v735, 32
    %v1028 = vpop.permute.xlu0 %1027
    %1029 = vrot.lane.b32.xlu0 %v738, 32
    %v1030 = vpop.permute.xlu0 %1029
    %1031 = vrot.lane.b32.xlu0 %v741, 32
    %v1032 = vpop.permute.xlu0 %1031
    %1033 = vrot.lane.b32.xlu0 %v744, 32
    %v1034 = vpop.permute.xlu0 %1033
    %1035 = vrot.lane.b32.xlu0 %v747, 32
    %v1036 = vpop.permute.xlu0 %1035
    %1037 = vrot.lane.b32.xlu0 %v750, 32
    %v1038 = vpop.permute.xlu0 %1037
    %1045 = vrot.lane.b32.xlu0 %v777, 64
    %v1046 = vpop.permute.xlu0 %1045
    %1047 = vrot.lane.b32.xlu0 %v780, 64
    %v1048 = vpop.permute.xlu0 %1047
    %1049 = vrot.lane.b32.xlu0 %v783, 64
    %v1050 = vpop.permute.xlu0 %1049
    %1051 = vrot.lane.b32.xlu0 %v786, 64
    %v1052 = vpop.permute.xlu0 %1051
    %1053 = vrot.lane.b32.xlu0 %v789, 64
    %v1054 = vpop.permute.xlu0 %1053
    %1055 = vrot.lane.b32.xlu0 %v792, 64
    %v1056 = vpop.permute.xlu0 %1055
    %1063 = vrot.lane.b32.xlu0 %v819, 96
    %v1064 = vpop.permute.xlu0 %1063
    %1065 = vrot.lane.b32.xlu0 %v822, 96
    %v1066 = vpop.permute.xlu0 %1065
    %1067 = vrot.lane.b32.xlu0 %v825, 96
    %v1068 = vpop.permute.xlu0 %1067
    %1069 = vrot.lane.b32.xlu0 %v828, 96
    %v1070 = vpop.permute.xlu0 %1069
    %1071 = vrot.lane.b32.xlu0 %v831, 96
    %v1072 = vpop.permute.xlu0 %1071
    %1073 = vrot.lane.b32.xlu0 %v834, 96
    %v1074 = vpop.permute.xlu0 %1073
    %1077 = vrot.lane.b32.xlu0 %v869, 32
    %v1078 = vpop.permute.xlu0 %1077
    %1079 = vrot.lane.b32.xlu0 %v872, 32
    %v1080 = vpop.permute.xlu0 %1079
    %1083 = vrot.lane.b32.xlu0 %v883, 64
    %v1084 = vpop.permute.xlu0 %1083
    %1085 = vrot.lane.b32.xlu0 %v886, 64
    %v1086 = vpop.permute.xlu0 %1085
    %1089 = vrot.lane.b32.xlu0 %v897, 96
    %v1090 = vpop.permute.xlu0 %1089
    %1091 = vrot.lane.b32.xlu0 %v900, 96
    %v1092 = vpop.permute.xlu0 %1091
    %1095 = vrot.lane.b32.xlu0 %v935, 32
    %v1096 = vpop.permute.xlu0 %1095
    %1097 = vrot.lane.b32.xlu0 %v938, 32
    %v1098 = vpop.permute.xlu0 %1097
    %1101 = vrot.lane.b32.xlu0 %v949, 64
    %v1102 = vpop.permute.xlu0 %1101
    %1103 = vrot.lane.b32.xlu0 %v952, 64
    %v1104 = vpop.permute.xlu0 %1103
    %1107 = vrot.lane.b32.xlu0 %v963, 96
    %v1108 = vpop.permute.xlu0 %1107
    %1109 = vrot.lane.b32.xlu0 %v966, 96
    %v1110 = vpop.permute.xlu0 %1109
    %vm1111 = vcmask 261120
    %v1113 = vsel %vm1111, %v483, %v974
    %v1115 = vsel %vm1111, %v486, %v976
    %v1117 = vsel %vm1111, %v489, %v978
    %v1119 = vsel %vm1111, %v492, %v980
    %v1121 = vsel %vm1111, %v495, %v982
    %v1123 = vsel %vm1111, %v498, %v984
    %vm1124 = vcmask 523264
    %v1126 = vsel %vm1124, %v1113, %v992
    %v1128 = vsel %vm1124, %v1115, %v994
    %v1130 = vsel %vm1124, %v1117, %v996
    %v1132 = vsel %vm1124, %v1119, %v998
    %v1134 = vsel %vm1124, %v1121, %v1000
    %v1136 = vsel %vm1124, %v1123, %v1002
    %vm1137 = vcmask 785408
    %v1139 = vsel %vm1137, %v1126, %v1010
    %v1142 = vsel %vm1137, %v1128, %v1012
    %v1144 = vsel %vm1137, %v1130, %v1014
    %v1146 = vsel %vm1137, %v1132, %v1016
    %v1148 = vsel %vm1137, %v1134, %v1018
    %v1150 = vsel %vm1137, %v1136, %v1020
    %v1152 = vsel %vm1111, %v681, %v1028
    %v1154 = vsel %vm1111, %v684, %v1030
    %v1156 = vsel %vm1111, %v687, %v1032
    %v1158 = vsel %vm1111, %v690, %v1034
    %v1160 = vsel %vm1111, %v693, %v1036
    %v1162 = vsel %vm1111, %v696, %v1038
    %v1164 = vsel %vm1124, %v1152, %v1046
    %v1166 = vsel %vm1124, %v1154, %v1048
    %v1168 = vsel %vm1124, %v1156, %v1050
    %v1170 = vsel %vm1124, %v1158, %v1052
    %v1172 = vsel %vm1124, %v1160, %v1054
    %v1174 = vsel %vm1124, %v1162, %v1056
    %v1176 = vsel %vm1137, %v1164, %v1064
    %v1179 = vsel %vm1137, %v1166, %v1066
    %v1181 = vsel %vm1137, %v1168, %v1068
    %v1183 = vsel %vm1137, %v1170, %v1070
    %v1185 = vsel %vm1137, %v1172, %v1072
    %v1187 = vsel %vm1137, %v1174, %v1074
    %v1189 = vsel %vm1111, %v851, %v1078
    %v1191 = vsel %vm1111, %v854, %v1080
    %v1193 = vsel %vm1124, %v1189, %v1084
    %v1195 = vsel %vm1124, %v1191, %v1086
    %v1198 = vsel %vm1137, %v1193, %v1090
    %v1200 = vsel %vm1137, %v1195, %v1092
    %v1202 = vsel %vm1111, %v917, %v1096
    %v1204 = vsel %vm1111, %v920, %v1098
    %v1206 = vsel %vm1124, %v1202, %v1102
    %v1208 = vsel %vm1124, %v1204, %v1104
    %v1211 = vsel %vm1137, %v1206, %v1108
    %v1213 = vsel %vm1137, %v1208, %v1110
    %v1214 = vshrl.u32 %v1142, 16
    %v1216 = vrot.slane %v1214, 6
    %v1217 = vshll.u32 %v1142, 16
    %v1219 = vrot.slane %v1217, 7
    %v1220 = vor.u32 %v1216, %v1219
    %v1221 = vshrl.u32 %v1179, 16
    %v1223 = vrot.slane %v1221, 6
    %v1224 = vshll.u32 %v1179, 16
    %v1226 = vrot.slane %v1224, 7
    %v1227 = vor.u32 %v1223, %v1226
    %v1228 = vshrl.u32 %v1144, 16
    %v1230 = vrot.slane %v1228, 6
    %v1231 = vshll.u32 %v1144, 16
    %v1233 = vrot.slane %v1231, 7
    %v1234 = vor.u32 %v1230, %v1233
    %v1235 = vshrl.u32 %v1181, 16
    %v1237 = vrot.slane %v1235, 6
    %v1238 = vshll.u32 %v1181, 16
    %v1240 = vrot.slane %v1238, 7
    %v1241 = vor.u32 %v1237, %v1240
    %v1250 = vrot.slane %v1144, 5
    %v1251 = vrot.slane %v1181, 5
    %v1252 = vrot.slane %v1198, 5
    %v1253 = vrot.slane %v1211, 5
    %v1254 = vshrl.u32 %v1146, 16
    %v1256 = vrot.slane %v1254, 3
    %v1257 = vshll.u32 %v1146, 16
    %v1259 = vrot.slane %v1257, 4
    %v1260 = vor.u32 %v1256, %v1259
    %v1261 = vshrl.u32 %v1183, 16
    %v1263 = vrot.slane %v1261, 3
    %v1264 = vshll.u32 %v1183, 16
    %v1266 = vrot.slane %v1264, 4
    %v1267 = vor.u32 %v1263, %v1266
    %v1268 = vshrl.u32 %v1148, 16
    %v1270 = vrot.slane %v1268, 3
    %v1271 = vshll.u32 %v1148, 16
    %v1273 = vrot.slane %v1271, 4
    %v1274 = vor.u32 %v1270, %v1273
    %v1275 = vshrl.u32 %v1185, 16
    %v1277 = vrot.slane %v1275, 3
    %v1278 = vshll.u32 %v1185, 16
    %v1280 = vrot.slane %v1278, 4
    %v1281 = vor.u32 %v1277, %v1280
    %v1290 = vrot.slane %v1148, 2
    %v1291 = vrot.slane %v1185, 2
    %v1292 = vrot.slane %v1150, 2
    %v1293 = vrot.slane %v1187, 2
    %v1294 = vshll.u32 %v1150, 16
    %v1296 = vrot.slane %v1294, 1
    %v1297 = vshll.u32 %v1187, 16
    %v1299 = vrot.slane %v1297, 1
    %v1300 = vshll.u32 %v1200, 16
    %v1302 = vrot.slane %v1300, 1
    %v1303 = vshll.u32 %v1213, 16
    %v1305 = vrot.slane %v1303, 1
    %v1306 = vshrl.u32 %v1150, 16
    %v1308 = vor.u32 %v1306, %v1296
    %v1309 = vshrl.u32 %v1187, 16
    %v1311 = vor.u32 %v1309, %v1299
    %v1312 = vshrl.u32 %v1200, 16
    %v1314 = vor.u32 %v1312, %v1302
    %v1315 = vshrl.u32 %v1213, 16
    %v1317 = vor.u32 %v1315, %v1305
    %vm1326 = vcmask 1041408
    %vm1327 = vsmask.f32 1280
    %vm1328 = vmand %vm1326, %vm1327
    %v1329 = vsel %vm1328, %v1139, %v1220
    %v1330 = vsel %vm1328, %v1176, %v1227
    %v1331 = vsel %vm1328, %v1142, %v1234
    %v1332 = vsel %vm1328, %v1179, %v1241
    %vm1333 = vcmask 1042432
    %v1336 = vsel %vm1333, %v1329, %v1250
    %v1340 = vsel %vm1333, %v1330, %v1251
    %v1344 = vsel %vm1333, %v1331, %v1252
    %v1348 = vsel %vm1333, %v1332, %v1253
    %vm1350 = vcmask 1044480
    %vm1351 = vsmask.f32 4352
    %vm1352 = vmand %vm1350, %vm1351
    %v1353 = vsel %vm1352, %v1336, %v1260
    %v1354 = vsel %vm1352, %v1340, %v1267
    %v1355 = vsel %vm1352, %v1344, %v1274
    %v1356 = vsel %vm1352, %v1348, %v1281
    %vm1357 = vcmask 1045504
    %v1360 = vsel %vm1357, %v1353, %v1290
    %v1364 = vsel %vm1357, %v1354, %v1291
    %v1368 = vsel %vm1357, %v1355, %v1292
    %v1372 = vsel %vm1357, %v1356, %v1293
    %vm1374 = vcmask 1047552
    %vm1375 = vsmask.f32 7424
    %vm1376 = vmand %vm1374, %vm1375
    %v1377 = vsel %vm1376, %v1360, %v1296
    %v1378 = vsel %vm1376, %v1364, %v1299
    %v1379 = vsel %vm1376, %v1368, %v1302
    %v1380 = vsel %vm1376, %v1372, %v1305
    %v1381 = vld [vmem:[%s2] sm:$0xf]
    %v1382 = vld [vmem:[%s2 + $0x4] sm:$0xf]
    %v1383 = vld [vmem:[%s2 + $0x8] sm:$0xf]
    %v1384 = vld [vmem:[%s2 + $0xc] sm:$0xf]
    %v1385 = vld [vmem:[%s2 + $0x10] sm:$0xf]
    %v1386 = vld [vmem:[%s2 + $0x14] sm:$0xf]
    %v1387 = vld [vmem:[%s2 + $0x18] sm:$0xf]
    %v1388 = vld [vmem:[%s2 + $0x1c] sm:$0xf]
    %v1389 = vld [vmem:[%s2 + $0x20] sm:$0xf]
    %v1390 = vld [vmem:[%s2 + $0x24] sm:$0xf]
    %v1391 = vld [vmem:[%s2 + $0x28] sm:$0xf]
    %v1392 = vld [vmem:[%s2 + $0x2c] sm:$0xf]
    %v1393 = vld [vmem:[%s2 + $0x30] sm:$0xf]
    %v1394 = vld [vmem:[%s2 + $0x34] sm:$0xf]
    %v1395 = vld [vmem:[%s2 + $0x38] sm:$0xf]
    %v1396 = vld [vmem:[%s2 + $0x3c] sm:$0xf]
    %v1397 = vld [vmem:[%s2 + $0x40] sm:$0xf]
    %v1398 = vld [vmem:[%s2 + $0x44] sm:$0xf]
    %v1399 = vld [vmem:[%s2 + $0x48] sm:$0xf]
    %v1400 = vld [vmem:[%s2 + $0x4c] sm:$0xf]
    %v1401 = vld [vmem:[%s2 + $0x50] sm:$0xf]
    %v1402 = vld [vmem:[%s2 + $0x54] sm:$0xf]
    %v1403 = vld [vmem:[%s2 + $0x58] sm:$0xf]
    %v1404 = vld [vmem:[%s2 + $0x5c] sm:$0xf]
    %v1405 = vld [vmem:[%s2 + $0x60] sm:$0xf]
    %v1406 = vld [vmem:[%s2 + $0x64] sm:$0xf]
    %v1407 = vld [vmem:[%s2 + $0x68] sm:$0xf]
    %v1408 = vld [vmem:[%s2 + $0x6c] sm:$0xf]
    %v1409 = vld [vmem:[%s2 + $0x70] sm:$0xf]
    %v1410 = vld [vmem:[%s2 + $0x74] sm:$0xf]
    %v1411 = vld [vmem:[%s2 + $0x78] sm:$0xf]
    %v1412 = vld [vmem:[%s2 + $0x7c] sm:$0xf]
    %v1413 = vld [vmem:[%s2 + $0x80] sm:$0xf]
    %v1414 = vld [vmem:[%s2 + $0x84] sm:$0xf]
    %v1415 = vld [vmem:[%s2 + $0x88] sm:$0xf]
    %v1416 = vld [vmem:[%s2 + $0x8c] sm:$0xf]
    %v1417 = vld [vmem:[%s2 + $0x90] sm:$0xf]
    %v1418 = vld [vmem:[%s2 + $0x94] sm:$0xf]
    %v1419 = vld [vmem:[%s2 + $0x98] sm:$0xf]
    %v1420 = vld [vmem:[%s2 + $0x9c] sm:$0xf]
    %v1421 = vld [vmem:[%s2 + $0xa0] sm:$0xf]
    %v1422 = vld [vmem:[%s2 + $0xa4] sm:$0xf]
    %v1423 = vld [vmem:[%s2 + $0xa8] sm:$0xf]
    %v1424 = vld [vmem:[%s2 + $0xac] sm:$0xf]
    %v1425 = vld [vmem:[%s2 + $0xb0] sm:$0xf]
    %v1426 = vld [vmem:[%s2 + $0xb4] sm:$0xf]
    %v1427 = vld [vmem:[%s2 + $0xb8] sm:$0xf]
    %v1428 = vld [vmem:[%s2 + $0xbc] sm:$0xf]
    %v1429 = vld [vmem:[%s2 + $0xc0] sm:$0xf]
    %v1430 = vld [vmem:[%s2 + $0xc4] sm:$0xf]
    %v1431 = vld [vmem:[%s2 + $0xc8] sm:$0xf]
    %v1432 = vld [vmem:[%s2 + $0xcc] sm:$0xf]
    %v1433 = vld [vmem:[%s2 + $0xd0] sm:$0xf]
    %v1434 = vld [vmem:[%s2 + $0xd4] sm:$0xf]
    %v1435 = vld [vmem:[%s2 + $0xd8] sm:$0xf]
    %v1436 = vld [vmem:[%s2 + $0xdc] sm:$0xf]
    %v1437 = vld [vmem:[%s2 + $0xe0] sm:$0xf]
    %v1438 = vld [vmem:[%s2 + $0xe4] sm:$0xf]
    %v1439 = vld [vmem:[%s2 + $0xe8] sm:$0xf]
    %v1440 = vld [vmem:[%s2 + $0xec] sm:$0xf]
    %v1441 = vld [vmem:[%s2 + $0xf0] sm:$0xf]
    %v1442 = vld [vmem:[%s2 + $0xf4] sm:$0xf]
    %v1443 = vld [vmem:[%s2 + $0xf8] sm:$0xf]
    %v1444 = vld [vmem:[%s2 + $0xfc] sm:$0xf]
    %v1509 = vunpack.c.l.b16 %v1381
    %v1510 = vunpack.c.l.b16 %v1382
    %v1511 = vunpack.c.l.b16 %v1383
    %v1512 = vunpack.c.l.b16 %v1384
    %v1513 = vunpack.c.l.b16 %v1385
    %v1514 = vunpack.c.l.b16 %v1386
    %v1515 = vunpack.c.l.b16 %v1387
    %v1516 = vunpack.c.l.b16 %v1388
    %v1517 = vunpack.c.l.b16 %v1389
    %v1518 = vunpack.c.l.b16 %v1390
    %v1519 = vunpack.c.l.b16 %v1391
    %v1520 = vunpack.c.l.b16 %v1392
    %v1521 = vunpack.c.l.b16 %v1393
    %v1522 = vunpack.c.l.b16 %v1394
    %v1523 = vunpack.c.l.b16 %v1395
    %v1524 = vunpack.c.l.b16 %v1396
    %v1525 = vunpack.c.l.b16 %v1397
    %v1526 = vunpack.c.l.b16 %v1398
    %v1527 = vunpack.c.l.b16 %v1399
    %v1528 = vunpack.c.l.b16 %v1400
    %v1529 = vunpack.c.l.b16 %v1401
    %v1530 = vunpack.c.l.b16 %v1402
    %v1531 = vunpack.c.l.b16 %v1403
    %v1532 = vunpack.c.l.b16 %v1404
    %v1533 = vunpack.c.l.b16 %v1405
    %v1534 = vunpack.c.l.b16 %v1406
    %v1535 = vunpack.c.l.b16 %v1407
    %v1536 = vunpack.c.l.b16 %v1408
    %v1537 = vunpack.c.l.b16 %v1409
    %v1538 = vunpack.c.l.b16 %v1410
    %v1539 = vunpack.c.l.b16 %v1411
    %v1540 = vunpack.c.l.b16 %v1412
    %v1541 = vunpack.c.l.b16 %v1413
    %v1542 = vunpack.c.l.b16 %v1414
    %v1543 = vunpack.c.l.b16 %v1415
    %v1544 = vunpack.c.l.b16 %v1416
    %v1545 = vunpack.c.l.b16 %v1417
    %v1546 = vunpack.c.l.b16 %v1418
    %v1547 = vunpack.c.l.b16 %v1419
    %v1548 = vunpack.c.l.b16 %v1420
    %v1549 = vunpack.c.l.b16 %v1421
    %v1550 = vunpack.c.l.b16 %v1422
    %v1551 = vunpack.c.l.b16 %v1423
    %v1552 = vunpack.c.l.b16 %v1424
    %v1553 = vunpack.c.l.b16 %v1425
    %v1554 = vunpack.c.l.b16 %v1426
    %v1555 = vunpack.c.l.b16 %v1427
    %v1556 = vunpack.c.l.b16 %v1428
    %v1557 = vunpack.c.l.b16 %v1429
    %v1558 = vunpack.c.l.b16 %v1430
    %v1559 = vunpack.c.l.b16 %v1431
    %v1560 = vunpack.c.l.b16 %v1432
    %v1561 = vunpack.c.l.b16 %v1433
    %v1562 = vunpack.c.l.b16 %v1434
    %v1563 = vunpack.c.l.b16 %v1435
    %v1564 = vunpack.c.l.b16 %v1436
    %v1565 = vunpack.c.l.b16 %v1437
    %v1566 = vunpack.c.l.b16 %v1438
    %v1567 = vunpack.c.l.b16 %v1439
    %v1568 = vunpack.c.l.b16 %v1440
    %v1569 = vunpack.c.l.b16 %v1441
    %v1570 = vunpack.c.l.b16 %v1442
    %v1571 = vunpack.c.l.b16 %v1443
    %v1572 = vunpack.c.l.b16 %v1444
    %v1573 = vpack.c.b16 %v1510, %v1509
    %v1574 = vpack.c.b16 %v1512, %v1511
    %v1575 = vpack.c.b16 %v1514, %v1513
    %v1576 = vpack.c.b16 %v1516, %v1515
    %v1577 = vpack.c.b16 %v1518, %v1517
    %v1578 = vpack.c.b16 %v1520, %v1519
    %v1579 = vpack.c.b16 %v1522, %v1521
    %v1580 = vpack.c.b16 %v1524, %v1523
    %v1581 = vpack.c.b16 %v1526, %v1525
    %v1582 = vpack.c.b16 %v1528, %v1527
    %v1583 = vpack.c.b16 %v1530, %v1529
    %v1584 = vpack.c.b16 %v1532, %v1531
    %v1585 = vpack.c.b16 %v1534, %v1533
    %v1586 = vpack.c.b16 %v1536, %v1535
    %v1587 = vpack.c.b16 %v1538, %v1537
    %v1588 = vpack.c.b16 %v1540, %v1539
    %v1589 = vpack.c.b16 %v1542, %v1541
    %v1590 = vpack.c.b16 %v1544, %v1543
    %v1591 = vpack.c.b16 %v1546, %v1545
    %v1592 = vpack.c.b16 %v1548, %v1547
    %v1593 = vpack.c.b16 %v1550, %v1549
    %v1594 = vpack.c.b16 %v1552, %v1551
    %v1595 = vpack.c.b16 %v1554, %v1553
    %v1596 = vpack.c.b16 %v1556, %v1555
    %v1597 = vpack.c.b16 %v1558, %v1557
    %v1598 = vpack.c.b16 %v1560, %v1559
    %v1599 = vpack.c.b16 %v1562, %v1561
    %v1600 = vpack.c.b16 %v1564, %v1563
    %v1601 = vpack.c.b16 %v1566, %v1565
    %v1602 = vpack.c.b16 %v1568, %v1567
    %v1603 = vpack.c.b16 %v1570, %v1569
    %v1604 = vpack.c.b16 %v1572, %v1571
    %1637 = vmatprep.subr.bf16.mxu0 0
    %1638 = vmatpush1.bf16.msra.mxu0 %v1580
    %1639 = vmatprep.subr.bf16.mxu0 0
    %1640 = vmatpush1.bf16.msra.mxu0 %v1579
    %1641 = vmatprep.subr.bf16.mxu0 0
    %1642 = vmatpush1.bf16.msra.mxu0 %v1578
    %1643 = vmatprep.subr.bf16.mxu0 0
    %1644 = vmatpush1.bf16.msra.mxu0 %v1577
    %1645 = vmatprep.subr.bf16.mxu0 0
    %1646 = vmatpush1.bf16.msra.mxu0 %v1576
    %1647 = vmatprep.subr.bf16.mxu0 0
    %1648 = vmatpush1.bf16.msra.mxu0 %v1575
    %1649 = vmatprep.subr.bf16.mxu0 0
    %1650 = vmatpush1.bf16.msra.mxu0 %v1574
    %1651 = vmatprep.subr.bf16.mxu0 0
    %1652 = vmatpush1.bf16.msra.mxu0 %v1573
    %1653 = vmatprep.subr.bf16.mxu0 0
    %1654 = vmatpush2.bf16.msra.mxu0 %v1588
    %1655 = vmatprep.subr.bf16.mxu0 0
    %1656 = vmatpush2.bf16.msra.mxu0 %v1587
    %1657 = vmatprep.subr.bf16.mxu0 0
    %1658 = vmatpush2.bf16.msra.mxu0 %v1586
    %1659 = vmatprep.subr.bf16.mxu0 0
    %1660 = vmatpush2.bf16.msra.mxu0 %v1585
    %1661 = vmatprep.subr.bf16.mxu0 0
    %1662 = vmatpush2.bf16.msra.mxu0 %v1584
    %1663 = vmatprep.subr.bf16.mxu0 0
    %1664 = vmatpush2.bf16.msra.mxu0 %v1583
    %1665 = vmatprep.subr.bf16.mxu0 0
    %1666 = vmatpush2.bf16.msra.mxu0 %v1582
    %1667 = vmatprep.subr.bf16.mxu0 0
    %1668 = vmatpush2.bf16.msra.mxu0 %v1581
    %1669 = vmatprep.mubr.bf16.mxu0 %v1378
    %1670 = vmatmul.mubr.bf16.gmra.mxu0 %v1377
    %v1671 = vpop.f32.mrf.mxu0
    %v1672 = vadd.f32 %v29, %v1671
    %v1673 = vpop.f32.mrf.mxu0
    %v1674 = vpop.f32.mrf.mxu0
    %v1675 = vadd.f32 %v29, %v1674
    %v1676 = vpop.f32.mrf.mxu0
    %1677 = vmatprep.mubr.bf16.mxu0 %v1311
    %1678 = vmatmul.mubr.bf16.gmra.mxu0 %v1308
    %v1679 = vpop.f32.mrf.mxu0
    %v1680 = vadd.f32 %v29, %v1679
    %v1681 = vpop.f32.mrf.mxu0
    %v1682 = vpop.f32.mrf.mxu0
    %v1683 = vpop.f32.mrf.mxu0
    %1684 = vdwg.mxu0
    %1685 = vmatprep.subr.bf16.mxu0 0
    %1686 = vmatpush1.bf16.msra.mxu0 %v1596
    %1687 = vmatprep.subr.bf16.mxu0 0
    %1688 = vmatpush1.bf16.msra.mxu0 %v1595
    %1689 = vmatprep.subr.bf16.mxu0 0
    %1690 = vmatpush1.bf16.msra.mxu0 %v1594
    %1691 = vmatprep.subr.bf16.mxu0 0
    %1692 = vmatpush1.bf16.msra.mxu0 %v1593
    %1693 = vmatprep.subr.bf16.mxu0 0
    %1694 = vmatpush1.bf16.msra.mxu0 %v1592
    %1695 = vmatprep.subr.bf16.mxu0 0
    %1696 = vmatpush1.bf16.msra.mxu0 %v1591
    %1697 = vmatprep.subr.bf16.mxu0 0
    %1698 = vmatpush1.bf16.msra.mxu0 %v1590
    %1699 = vmatprep.subr.bf16.mxu0 0
    %1700 = vmatpush1.bf16.msra.mxu0 %v1589
    %1701 = vmatprep.subr.bf16.mxu0 0
    %1702 = vmatpush2.bf16.msra.mxu0 %v1604
    %1703 = vmatprep.subr.bf16.mxu0 0
    %1704 = vmatpush2.bf16.msra.mxu0 %v1603
    %1705 = vmatprep.subr.bf16.mxu0 0
    %1706 = vmatpush2.bf16.msra.mxu0 %v1602
    %1707 = vmatprep.subr.bf16.mxu0 0
    %1708 = vmatpush2.bf16.msra.mxu0 %v1601
    %1709 = vmatprep.subr.bf16.mxu0 0
    %1710 = vmatpush2.bf16.msra.mxu0 %v1600
    %1711 = vmatprep.subr.bf16.mxu0 0
    %1712 = vmatpush2.bf16.msra.mxu0 %v1599
    %1713 = vmatprep.subr.bf16.mxu0 0
    %1714 = vmatpush2.bf16.msra.mxu0 %v1598
    %1715 = vmatprep.subr.bf16.mxu0 0
    %1716 = vmatpush2.bf16.msra.mxu0 %v1597
    %1717 = vmatprep.mubr.bf16.mxu0 %v1380
    %1718 = vmatmul.mubr.bf16.gmra.mxu0 %v1379
    %v1719 = vpop.f32.mrf.mxu0
    %v1720 = vadd.f32 %v1672, %v1719
    %v1721 = vpop.f32.mrf.mxu0
    %v1722 = vpop.f32.mrf.mxu0
    %v1723 = vadd.f32 %v1675, %v1722
    %v1724 = vpop.f32.mrf.mxu0
    %1725 = vmatprep.mubr.bf16.mxu0 %v1317
    %1726 = vmatmul.mubr.bf16.gmra.mxu0 %v1314
    %v1727 = vpop.f32.mrf.mxu0
    %v1728 = vadd.f32 %v1680, %v1727
    %v1729 = vpop.f32.mrf.mxu0
    %v1730 = vpop.f32.mrf.mxu0
    %v1731 = vpop.f32.mrf.mxu0
    %1732 = vdwg.mxu0
    %v1733 = vmax.f32 %v1720, 0.0
    %v1734 = vmax.f32 %v1723, 0.0
    %v1735 = vmax.f32 %v1728, 0.0
    %v1736 = vpack.c.bf16 %v1734, %v1733
    %v1737 = vpack.c.bf16 %v1735, %v1735
    %v1739 = vshrl.u32 %v1736, 16
    %1741 = vrot.lane.b32.xlu0 %v1739, 64
    %v1742 = vpop.permute.xlu0 %1741
    %v1744 = vrot.slane %v1736, 1
    %v1745 = vrot.slane %v1739, 1
    %1746 = vrot.lane.b32.xlu0 %v1745, 64
    %v1747 = vpop.permute.xlu0 %1746
    %v1748 = vrot.slane %v1736, 2
    %v1749 = vrot.slane %v1739, 2
    %1750 = vrot.lane.b32.xlu0 %v1749, 64
    %v1751 = vpop.permute.xlu0 %1750
    %v1752 = vrot.slane %v1736, 3
    %v1753 = vrot.slane %v1739, 3
    %1754 = vrot.lane.b32.xlu0 %v1753, 64
    %v1755 = vpop.permute.xlu0 %1754
    %v1756 = vrot.slane %v1736, 4
    %v1759 = vsel %vm1124, %v1736, %v1742
    %v1763 = vsel %vm1124, %v1744, %v1747
    %v1767 = vsel %vm1124, %v1748, %v1751
    %v1771 = vsel %vm1124, %v1752, %v1755
    %v1773 = vshll.u32 %v1736, 16
    %v1775 = vrot.slane %v1773, 1
    %1776 = vrot.lane.b32.xlu0 %v1775, 64
    %v1777 = vpop.permute.xlu0 %1776
    %v1778 = vrot.slane %v1773, 2
    %1779 = vrot.lane.b32.xlu0 %v1778, 64
    %v1780 = vpop.permute.xlu0 %1779
    %v1781 = vrot.slane %v1773, 3
    %1782 = vrot.lane.b32.xlu0 %v1781, 64
    %v1783 = vpop.permute.xlu0 %1782
    %v1785 = vshll.u32 %v1737, 16
    %v1787 = vrot.slane %v1785, 4
    %1788 = vrot.lane.b32.xlu0 %v1787, 64
    %v1789 = vpop.permute.xlu0 %1788
    %v1791 = vrot.slane %v1737, 4
    %v1793 = vsel %vm1124, %v1736, %v1777
    %v1795 = vsel %vm1124, %v1744, %v1780
    %v1797 = vsel %vm1124, %v1748, %v1783
    %v1799 = vsel %vm1124, %v1752, %v1789
    %v1804 = vrot.slane %v1793, 4
    %v1805 = vrot.slane %v1795, 4
    %v1806 = vrot.slane %v1797, 4
    %v1807 = vrot.slane %v1799, 4
    %v1808 = vrot.slane %v1791, 4
    %v1814 = vsel %vm473, %v1759, %v1804
    %v1815 = vsel %vm473, %v1763, %v1805
    %v1816 = vsel %vm473, %v1767, %v1806
    %v1817 = vsel %vm473, %v1771, %v1807
    %v1818 = vsel %vm473, %v1756, %v1808
    %v1819 = vld [vmem:[%s3] sm:$0xf]
    %v1820 = vld [vmem:[%s3 + $0x4] sm:$0xf]
    %v1821 = vld [vmem:[%s3 + $0x8] sm:$0xf]
    %v1822 = vld [vmem:[%s3 + $0xc] sm:$0xf]
    %v1823 = vld [vmem:[%s3 + $0x10] sm:$0xf]
    %v1824 = vld [vmem:[%s3 + $0x14] sm:$0xf]
    %v1825 = vld [vmem:[%s3 + $0x18] sm:$0xf]
    %v1826 = vld [vmem:[%s3 + $0x1c] sm:$0xf]
    %v1827 = vld [vmem:[%s3 + $0x20] sm:$0xf]
    %v1828 = vld [vmem:[%s3 + $0x24] sm:$0xf]
    %v1829 = vld [vmem:[%s3 + $0x28] sm:$0xf]
    %v1830 = vld [vmem:[%s3 + $0x2c] sm:$0xf]
    %v1831 = vld [vmem:[%s3 + $0x30] sm:$0xf]
    %v1832 = vld [vmem:[%s3 + $0x34] sm:$0xf]
    %v1833 = vld [vmem:[%s3 + $0x38] sm:$0xf]
    %v1834 = vld [vmem:[%s3 + $0x3c] sm:$0xf]
    %v1835 = vld [vmem:[%s3 + $0x40] sm:$0xf]
    %v1836 = vld [vmem:[%s3 + $0x44] sm:$0xf]
    %v1837 = vld [vmem:[%s3 + $0x48] sm:$0xf]
    %v1838 = vld [vmem:[%s3 + $0x4c] sm:$0xf]
    %v1839 = vld [vmem:[%s3 + $0x50] sm:$0xf]
    %v1840 = vld [vmem:[%s3 + $0x54] sm:$0xf]
    %v1841 = vld [vmem:[%s3 + $0x58] sm:$0xf]
    %v1842 = vld [vmem:[%s3 + $0x5c] sm:$0xf]
    %v1843 = vld [vmem:[%s3 + $0x60] sm:$0xf]
    %v1844 = vld [vmem:[%s3 + $0x64] sm:$0xf]
    %v1845 = vld [vmem:[%s3 + $0x68] sm:$0xf]
    %v1846 = vld [vmem:[%s3 + $0x6c] sm:$0xf]
    %v1847 = vld [vmem:[%s3 + $0x70] sm:$0xf]
    %v1848 = vld [vmem:[%s3 + $0x74] sm:$0xf]
    %v1849 = vld [vmem:[%s3 + $0x78] sm:$0xf]
    %v1850 = vld [vmem:[%s3 + $0x7c] sm:$0xf]
    %v1851 = vld [vmem:[%s3 + $0x80] sm:$0xf]
    %v1852 = vld [vmem:[%s3 + $0x84] sm:$0xf]
    %v1853 = vld [vmem:[%s3 + $0x88] sm:$0xf]
    %v1854 = vld [vmem:[%s3 + $0x8c] sm:$0xf]
    %v1855 = vld [vmem:[%s3 + $0x90] sm:$0xf]
    %v1856 = vld [vmem:[%s3 + $0x94] sm:$0xf]
    %v1857 = vld [vmem:[%s3 + $0x98] sm:$0xf]
    %v1858 = vld [vmem:[%s3 + $0x9c] sm:$0xf]
    %v1859 = vld [vmem:[%s3 + $0xa0] sm:$0xf]
    %v1860 = vld [vmem:[%s3 + $0xa4] sm:$0xf]
    %v1861 = vld [vmem:[%s3 + $0xa8] sm:$0xf]
    %v1862 = vld [vmem:[%s3 + $0xac] sm:$0xf]
    %v1863 = vld [vmem:[%s3 + $0xb0] sm:$0xf]
    %v1864 = vld [vmem:[%s3 + $0xb4] sm:$0xf]
    %v1865 = vld [vmem:[%s3 + $0xb8] sm:$0xf]
    %v1866 = vld [vmem:[%s3 + $0xbc] sm:$0xf]
    %v1867 = vld [vmem:[%s3 + $0xc0] sm:$0xf]
    %v1868 = vld [vmem:[%s3 + $0xc4] sm:$0xf]
    %v1869 = vld [vmem:[%s3 + $0xc8] sm:$0xf]
    %v1870 = vld [vmem:[%s3 + $0xcc] sm:$0xf]
    %v1871 = vld [vmem:[%s3 + $0xd0] sm:$0xf]
    %v1872 = vld [vmem:[%s3 + $0xd4] sm:$0xf]
    %v1873 = vld [vmem:[%s3 + $0xd8] sm:$0xf]
    %v1874 = vld [vmem:[%s3 + $0xdc] sm:$0xf]
    %v1875 = vld [vmem:[%s3 + $0xe0] sm:$0xf]
    %v1876 = vld [vmem:[%s3 + $0xe4] sm:$0xf]
    %v1877 = vld [vmem:[%s3 + $0xe8] sm:$0xf]
    %v1878 = vld [vmem:[%s3 + $0xec] sm:$0xf]
    %v1879 = vld [vmem:[%s3 + $0xf0] sm:$0xf]
    %v1880 = vld [vmem:[%s3 + $0xf4] sm:$0xf]
    %v1881 = vld [vmem:[%s3 + $0xf8] sm:$0xf]
    %v1882 = vld [vmem:[%s3 + $0xfc] sm:$0xf]
    %v1883 = vld [vmem:[%s3 + $0x100] sm:$0xf]
    %v1884 = vld [vmem:[%s3 + $0x104] sm:$0xf]
    %v1885 = vld [vmem:[%s3 + $0x108] sm:$0xf]
    %v1886 = vld [vmem:[%s3 + $0x10c] sm:$0xf]
    %v1887 = vld [vmem:[%s3 + $0x110] sm:$0xf]
    %v1888 = vld [vmem:[%s3 + $0x114] sm:$0xf]
    %v1889 = vld [vmem:[%s3 + $0x118] sm:$0xf]
    %v1890 = vld [vmem:[%s3 + $0x11c] sm:$0xf]
    %v1963 = vunpack.c.l.b16 %v1819
    %v1964 = vunpack.c.l.b16 %v1820
    %v1965 = vunpack.c.l.b16 %v1821
    %v1966 = vunpack.c.l.b16 %v1822
    %v1967 = vunpack.c.l.b16 %v1823
    %v1968 = vunpack.c.l.b16 %v1824
    %v1969 = vunpack.c.l.b16 %v1825
    %v1970 = vunpack.c.l.b16 %v1826
    %v1971 = vunpack.c.l.b16 %v1827
    %v1972 = vunpack.c.l.b16 %v1828
    %v1973 = vunpack.c.l.b16 %v1829
    %v1974 = vunpack.c.l.b16 %v1830
    %v1975 = vunpack.c.l.b16 %v1831
    %v1976 = vunpack.c.l.b16 %v1832
    %v1977 = vunpack.c.l.b16 %v1833
    %v1978 = vunpack.c.l.b16 %v1834
    %v1979 = vunpack.c.l.b16 %v1835
    %v1980 = vunpack.c.l.b16 %v1836
    %v1981 = vunpack.c.l.b16 %v1837
    %v1982 = vunpack.c.l.b16 %v1838
    %v1983 = vunpack.c.l.b16 %v1839
    %v1984 = vunpack.c.l.b16 %v1840
    %v1985 = vunpack.c.l.b16 %v1841
    %v1986 = vunpack.c.l.b16 %v1842
    %v1987 = vunpack.c.l.b16 %v1843
    %v1988 = vunpack.c.l.b16 %v1844
    %v1989 = vunpack.c.l.b16 %v1845
    %v1990 = vunpack.c.l.b16 %v1846
    %v1991 = vunpack.c.l.b16 %v1847
    %v1992 = vunpack.c.l.b16 %v1848
    %v1993 = vunpack.c.l.b16 %v1849
    %v1994 = vunpack.c.l.b16 %v1850
    %v1995 = vunpack.c.l.b16 %v1851
    %v1996 = vunpack.c.l.b16 %v1852
    %v1997 = vunpack.c.l.b16 %v1853
    %v1998 = vunpack.c.l.b16 %v1854
    %v1999 = vunpack.c.l.b16 %v1855
    %v2000 = vunpack.c.l.b16 %v1856
    %v2001 = vunpack.c.l.b16 %v1857
    %v2002 = vunpack.c.l.b16 %v1858
    %v2003 = vunpack.c.l.b16 %v1859
    %v2004 = vunpack.c.l.b16 %v1860
    %v2005 = vunpack.c.l.b16 %v1861
    %v2006 = vunpack.c.l.b16 %v1862
    %v2007 = vunpack.c.l.b16 %v1863
    %v2008 = vunpack.c.l.b16 %v1864
    %v2009 = vunpack.c.l.b16 %v1865
    %v2010 = vunpack.c.l.b16 %v1866
    %v2011 = vunpack.c.l.b16 %v1867
    %v2012 = vunpack.c.l.b16 %v1868
    %v2013 = vunpack.c.l.b16 %v1869
    %v2014 = vunpack.c.l.b16 %v1870
    %v2015 = vunpack.c.l.b16 %v1871
    %v2016 = vunpack.c.l.b16 %v1872
    %v2017 = vunpack.c.l.b16 %v1873
    %v2018 = vunpack.c.l.b16 %v1874
    %v2019 = vunpack.c.l.b16 %v1875
    %v2020 = vunpack.c.l.b16 %v1876
    %v2021 = vunpack.c.l.b16 %v1877
    %v2022 = vunpack.c.l.b16 %v1878
    %v2023 = vunpack.c.l.b16 %v1879
    %v2024 = vunpack.c.l.b16 %v1880
    %v2025 = vunpack.c.l.b16 %v1881
    %v2026 = vunpack.c.l.b16 %v1882
    %v2027 = vunpack.c.l.b16 %v1883
    %v2028 = vunpack.c.l.b16 %v1884
    %v2029 = vunpack.c.l.b16 %v1885
    %v2030 = vunpack.c.l.b16 %v1886
    %v2031 = vunpack.c.l.b16 %v1887
    %v2032 = vunpack.c.l.b16 %v1888
    %v2033 = vunpack.c.l.b16 %v1889
    %v2034 = vunpack.c.l.b16 %v1890
    %v2035 = vpack.c.b16 %v1964, %v1963
    %v2036 = vpack.c.b16 %v1966, %v1965
    %v2037 = vpack.c.b16 %v1968, %v1967
    %v2038 = vpack.c.b16 %v1970, %v1969
    %v2039 = vpack.c.b16 %v1972, %v1971
    %v2040 = vpack.c.b16 %v1974, %v1973
    %v2041 = vpack.c.b16 %v1976, %v1975
    %v2042 = vpack.c.b16 %v1978, %v1977
    %v2043 = vpack.c.b16 %v1980, %v1979
    %v2044 = vpack.c.b16 %v1982, %v1981
    %v2045 = vpack.c.b16 %v1984, %v1983
    %v2046 = vpack.c.b16 %v1986, %v1985
    %v2047 = vpack.c.b16 %v1988, %v1987
    %v2048 = vpack.c.b16 %v1990, %v1989
    %v2049 = vpack.c.b16 %v1992, %v1991
    %v2050 = vpack.c.b16 %v1994, %v1993
    %v2051 = vpack.c.b16 %v1996, %v1995
    %v2052 = vpack.c.b16 %v1998, %v1997
    %v2053 = vpack.c.b16 %v2000, %v1999
    %v2054 = vpack.c.b16 %v2002, %v2001
    %v2055 = vpack.c.b16 %v2004, %v2003
    %v2056 = vpack.c.b16 %v2006, %v2005
    %v2057 = vpack.c.b16 %v2008, %v2007
    %v2058 = vpack.c.b16 %v2010, %v2009
    %v2059 = vpack.c.b16 %v2012, %v2011
    %v2060 = vpack.c.b16 %v2014, %v2013
    %v2061 = vpack.c.b16 %v2016, %v2015
    %v2062 = vpack.c.b16 %v2018, %v2017
    %v2063 = vpack.c.b16 %v2020, %v2019
    %v2064 = vpack.c.b16 %v2022, %v2021
    %v2065 = vpack.c.b16 %v2024, %v2023
    %v2066 = vpack.c.b16 %v2026, %v2025
    %v2067 = vpack.c.b16 %v2028, %v2027
    %v2068 = vpack.c.b16 %v2030, %v2029
    %v2069 = vpack.c.b16 %v2032, %v2031
    %v2070 = vpack.c.b16 %v2034, %v2033
    %v2108 = vsel %vm1124, %v1818, 0
    %2110 = vmatprep.subr.bf16.mxu0 0
    %2111 = vmatpush1.bf16.msra.mxu0 %v2042
    %2112 = vmatprep.subr.bf16.mxu0 0
    %2113 = vmatpush1.bf16.msra.mxu0 %v2041
    %2114 = vmatprep.subr.bf16.mxu0 0
    %2115 = vmatpush1.bf16.msra.mxu0 %v2040
    %2116 = vmatprep.subr.bf16.mxu0 0
    %2117 = vmatpush1.bf16.msra.mxu0 %v2039
    %2118 = vmatprep.subr.bf16.mxu0 0
    %2119 = vmatpush1.bf16.msra.mxu0 %v2038
    %2120 = vmatprep.subr.bf16.mxu0 0
    %2121 = vmatpush1.bf16.msra.mxu0 %v2037
    %2122 = vmatprep.subr.bf16.mxu0 0
    %2123 = vmatpush1.bf16.msra.mxu0 %v2036
    %2124 = vmatprep.subr.bf16.mxu0 0
    %2125 = vmatpush1.bf16.msra.mxu0 %v2035
    %2126 = vmatprep.subr.bf16.mxu0 0
    %2127 = vmatpush2.bf16.msra.mxu0 %v2050
    %2128 = vmatprep.subr.bf16.mxu0 0
    %2129 = vmatpush2.bf16.msra.mxu0 %v2049
    %2130 = vmatprep.subr.bf16.mxu0 0
    %2131 = vmatpush2.bf16.msra.mxu0 %v2048
    %2132 = vmatprep.subr.bf16.mxu0 0
    %2133 = vmatpush2.bf16.msra.mxu0 %v2047
    %2134 = vmatprep.subr.bf16.mxu0 0
    %2135 = vmatpush2.bf16.msra.mxu0 %v2046
    %2136 = vmatprep.subr.bf16.mxu0 0
    %2137 = vmatpush2.bf16.msra.mxu0 %v2045
    %2138 = vmatprep.subr.bf16.mxu0 0
    %2139 = vmatpush2.bf16.msra.mxu0 %v2044
    %2140 = vmatprep.subr.bf16.mxu0 0
    %2141 = vmatpush2.bf16.msra.mxu0 %v2043
    %2142 = vmatprep.mubr.bf16.mxu0 %v1815
    %2143 = vmatmul.mubr.bf16.gmra.mxu0 %v1814
    %v2144 = vpop.f32.mrf.mxu0
    %v2145 = vadd.f32 %v30, %v2144
    %v2146 = vpop.f32.mrf.mxu0
    %v2147 = vpop.f32.mrf.mxu0
    %v2148 = vpop.f32.mrf.mxu0
    %2149 = vdwg.mxu0
    %2150 = vmatprep.subr.bf16.mxu0 0
    %2151 = vmatpush1.bf16.msra.mxu0 %v2058
    %2152 = vmatprep.subr.bf16.mxu0 0
    %2153 = vmatpush1.bf16.msra.mxu0 %v2057
    %2154 = vmatprep.subr.bf16.mxu0 0
    %2155 = vmatpush1.bf16.msra.mxu0 %v2056
    %2156 = vmatprep.subr.bf16.mxu0 0
    %2157 = vmatpush1.bf16.msra.mxu0 %v2055
    %2158 = vmatprep.subr.bf16.mxu0 0
    %2159 = vmatpush1.bf16.msra.mxu0 %v2054
    %2160 = vmatprep.subr.bf16.mxu0 0
    %2161 = vmatpush1.bf16.msra.mxu0 %v2053
    %2162 = vmatprep.subr.bf16.mxu0 0
    %2163 = vmatpush1.bf16.msra.mxu0 %v2052
    %2164 = vmatprep.subr.bf16.mxu0 0
    %2165 = vmatpush1.bf16.msra.mxu0 %v2051
    %2166 = vmatprep.subr.bf16.mxu0 0
    %2167 = vmatpush2.bf16.msra.mxu0 %v2066
    %2168 = vmatprep.subr.bf16.mxu0 0
    %2169 = vmatpush2.bf16.msra.mxu0 %v2065
    %2170 = vmatprep.subr.bf16.mxu0 0
    %2171 = vmatpush2.bf16.msra.mxu0 %v2064
    %2172 = vmatprep.subr.bf16.mxu0 0
    %2173 = vmatpush2.bf16.msra.mxu0 %v2063
    %2174 = vmatprep.subr.bf16.mxu0 0
    %2175 = vmatpush2.bf16.msra.mxu0 %v2062
    %2176 = vmatprep.subr.bf16.mxu0 0
    %2177 = vmatpush2.bf16.msra.mxu0 %v2061
    %2178 = vmatprep.subr.bf16.mxu0 0
    %2179 = vmatpush2.bf16.msra.mxu0 %v2060
    %2180 = vmatprep.subr.bf16.mxu0 0
    %2181 = vmatpush2.bf16.msra.mxu0 %v2059
    %2182 = vmatprep.mubr.bf16.mxu0 %v1817
    %2183 = vmatmul.mubr.bf16.gmra.mxu0 %v1816
    %v2184 = vpop.f32.mrf.mxu0
    %v2185 = vadd.f32 %v2145, %v2184
    %v2186 = vpop.f32.mrf.mxu0
    %v2187 = vpop.f32.mrf.mxu0
    %v2188 = vpop.f32.mrf.mxu0
    %2189 = vdwg.mxu0
    %2190 = vmatprep.subr.bf16.mxu0 0
    %2191 = vmatpush1.bf16.msra.mxu0 0
    %2192 = vmatprep.subr.bf16.mxu0 0
    %2193 = vmatpush1.bf16.msra.mxu0 0
    %2194 = vmatprep.subr.bf16.mxu0 0
    %2195 = vmatpush1.bf16.msra.mxu0 0
    %2196 = vmatprep.subr.bf16.mxu0 0
    %2197 = vmatpush1.bf16.msra.mxu0 0
    %2198 = vmatprep.subr.bf16.mxu0 0
    %2199 = vmatpush1.bf16.msra.mxu0 %v2070
    %2200 = vmatprep.subr.bf16.mxu0 0
    %2201 = vmatpush1.bf16.msra.mxu0 %v2069
    %2202 = vmatprep.subr.bf16.mxu0 0
    %2203 = vmatpush1.bf16.msra.mxu0 %v2068
    %2204 = vmatprep.subr.bf16.mxu0 0
    %2205 = vmatpush1.bf16.msra.mxu0 %v2067
    %2206 = vmatprep.subr.bf16.mxu0 0
    %2207 = vmatpush2.bf16.msra.mxu0 0
    %2208 = vmatprep.subr.bf16.mxu0 0
    %2209 = vmatpush2.bf16.msra.mxu0 0
    %2210 = vmatprep.subr.bf16.mxu0 0
    %2211 = vmatpush2.bf16.msra.mxu0 0
    %2212 = vmatprep.subr.bf16.mxu0 0
    %2213 = vmatpush2.bf16.msra.mxu0 0
    %2214 = vmatprep.subr.bf16.mxu0 0
    %2215 = vmatpush2.bf16.msra.mxu0 0
    %2216 = vmatprep.subr.bf16.mxu0 0
    %2217 = vmatpush2.bf16.msra.mxu0 0
    %2218 = vmatprep.subr.bf16.mxu0 0
    %2219 = vmatpush2.bf16.msra.mxu0 0
    %2220 = vmatprep.subr.bf16.mxu0 0
    %2221 = vmatpush2.bf16.msra.mxu0 0
    %2222 = vmatprep.mubr.bf16.mxu0 0
    %2223 = vmatmul.mubr.bf16.gmra.mxu0 %v2108
    %v2224 = vpop.f32.mrf.mxu0
    %v2225 = vadd.f32 %v2185, %v2224
    %v2226 = vpop.f32.mrf.mxu0
    %v2227 = vpop.f32.mrf.mxu0
    %v2228 = vpop.f32.mrf.mxu0
    %2229 = vdwg.mxu0
    %v2230 = vmax.f32 %v2225, 0.0
    %v2231 = vpack.c.bf16 %v2230, %v2230
    %v2232 = vld [vmem:[%s4] sm:$0xff]
    %v2233 = vld [vmem:[%s4 + $0x8] sm:$0xff]
    %v2234 = vld [vmem:[%s4 + $0x10] sm:$0xff]
    %v2235 = vld [vmem:[%s4 + $0x18] sm:$0xff]
    %v2236 = vld [vmem:[%s4 + $0x20] sm:$0xff]
    %v2237 = vld [vmem:[%s4 + $0x28] sm:$0xff]
    %v2238 = vld [vmem:[%s4 + $0x30] sm:$0xff]
    %v2239 = vld [vmem:[%s4 + $0x38] sm:$0xff]
    %v2240 = vld [vmem:[%s4 + $0x40] sm:$0xff]
    %v2241 = vld [vmem:[%s4 + $0x48] sm:$0xff]
    %v2242 = vld [vmem:[%s4 + $0x50] sm:$0xff]
    %v2243 = vld [vmem:[%s4 + $0x58] sm:$0xff]
    %v2244 = vld [vmem:[%s4 + $0x60] sm:$0xff]
    %v2245 = vld [vmem:[%s4 + $0x68] sm:$0xff]
    %v2246 = vld [vmem:[%s4 + $0x70] sm:$0xff]
    %v2247 = vld [vmem:[%s4 + $0x78] sm:$0xff]
    %v2249 = vlaneseq
    %v2250 = vshrl.u32 %v2249, 7
    %v2251 = vsub.s32 0, %v2250
    %v2252 = vrot.slane %v32, %v2251
    %v2253 = vlaneseq
    %v2254 = vshrl.u32 %v2253, 7
    %v2255 = vsub.s32 1, %v2254
    %v2256 = vrot.slane %v32, %v2255
    %v2257 = vlaneseq
    %v2258 = vshrl.u32 %v2257, 7
    %v2259 = vsub.s32 2, %v2258
    %v2260 = vrot.slane %v32, %v2259
    %v2261 = vlaneseq
    %v2262 = vshrl.u32 %v2261, 7
    %v2263 = vsub.s32 3, %v2262
    %v2264 = vrot.slane %v32, %v2263
    %v2285 = vunpack.c.l.b16 %v2232
    %v2286 = vunpack.c.h.b16 %v2232
    %v2287 = vunpack.c.l.b16 %v2233
    %v2288 = vunpack.c.h.b16 %v2233
    %v2289 = vunpack.c.l.b16 %v2234
    %v2290 = vunpack.c.h.b16 %v2234
    %v2291 = vunpack.c.l.b16 %v2235
    %v2292 = vunpack.c.h.b16 %v2235
    %v2293 = vunpack.c.l.b16 %v2236
    %v2294 = vunpack.c.h.b16 %v2236
    %v2295 = vunpack.c.l.b16 %v2237
    %v2296 = vunpack.c.h.b16 %v2237
    %v2297 = vunpack.c.l.b16 %v2238
    %v2298 = vunpack.c.h.b16 %v2238
    %v2299 = vunpack.c.l.b16 %v2239
    %v2300 = vunpack.c.h.b16 %v2239
    %v2301 = vunpack.c.l.b16 %v2240
    %v2302 = vunpack.c.h.b16 %v2240
    %v2303 = vunpack.c.l.b16 %v2241
    %v2304 = vunpack.c.h.b16 %v2241
    %v2305 = vunpack.c.l.b16 %v2242
    %v2306 = vunpack.c.h.b16 %v2242
    %v2307 = vunpack.c.l.b16 %v2243
    %v2308 = vunpack.c.h.b16 %v2243
    %v2309 = vunpack.c.l.b16 %v2244
    %v2310 = vunpack.c.h.b16 %v2244
    %v2311 = vunpack.c.l.b16 %v2245
    %v2312 = vunpack.c.h.b16 %v2245
    %v2313 = vunpack.c.l.b16 %v2246
    %v2314 = vunpack.c.h.b16 %v2246
    %v2315 = vunpack.c.l.b16 %v2247
    %v2316 = vunpack.c.h.b16 %v2247
    %v2317 = vpack.c.b16 %v2289, %v2285
    %v2318 = vpack.c.b16 %v2290, %v2286
    %v2319 = vpack.c.b16 %v2291, %v2287
    %v2320 = vpack.c.b16 %v2292, %v2288
    %v2321 = vpack.c.b16 %v2297, %v2293
    %v2322 = vpack.c.b16 %v2298, %v2294
    %v2323 = vpack.c.b16 %v2299, %v2295
    %v2324 = vpack.c.b16 %v2300, %v2296
    %v2325 = vpack.c.b16 %v2305, %v2301
    %v2326 = vpack.c.b16 %v2306, %v2302
    %v2327 = vpack.c.b16 %v2307, %v2303
    %v2328 = vpack.c.b16 %v2308, %v2304
    %v2329 = vpack.c.b16 %v2313, %v2309
    %v2330 = vpack.c.b16 %v2314, %v2310
    %v2331 = vpack.c.b16 %v2315, %v2311
    %v2332 = vpack.c.b16 %v2316, %v2312
    %v2350 = vsel %vm1124, %v2231, 0
    %2352 = vmatprep.subr.bf16.mxu0 0
    %2353 = vmatpush1.bf16.msra.mxu0 0
    %2354 = vmatprep.subr.bf16.mxu0 0
    %2355 = vmatpush1.bf16.msra.mxu0 0
    %2356 = vmatprep.subr.bf16.mxu0 0
    %2357 = vmatpush1.bf16.msra.mxu0 0
    %2358 = vmatprep.subr.bf16.mxu0 0
    %2359 = vmatpush1.bf16.msra.mxu0 0
    %2360 = vmatprep.subr.bf16.mxu0 %v2330
    %2361 = vmatpush1.bf16.msra.mxu0 %v2329
    %2362 = vmatprep.subr.bf16.mxu0 %v2326
    %2363 = vmatpush1.bf16.msra.mxu0 %v2325
    %2364 = vmatprep.subr.bf16.mxu0 %v2322
    %2365 = vmatpush1.bf16.msra.mxu0 %v2321
    %2366 = vmatprep.subr.bf16.mxu0 %v2318
    %2367 = vmatpush1.bf16.msra.mxu0 %v2317
    %2368 = vmatprep.subr.bf16.mxu0 0
    %2369 = vmatpush2.bf16.msra.mxu0 0
    %2370 = vmatprep.subr.bf16.mxu0 0
    %2371 = vmatpush2.bf16.msra.mxu0 0
    %2372 = vmatprep.subr.bf16.mxu0 0
    %2373 = vmatpush2.bf16.msra.mxu0 0
    %2374 = vmatprep.subr.bf16.mxu0 0
    %2375 = vmatpush2.bf16.msra.mxu0 0
    %2376 = vmatprep.subr.bf16.mxu0 0
    %2377 = vmatpush2.bf16.msra.mxu0 0
    %2378 = vmatprep.subr.bf16.mxu0 0
    %2379 = vmatpush2.bf16.msra.mxu0 0
    %2380 = vmatprep.subr.bf16.mxu0 0
    %2381 = vmatpush2.bf16.msra.mxu0 0
    %2382 = vmatprep.subr.bf16.mxu0 0
    %2383 = vmatpush2.bf16.msra.mxu0 0
    %2384 = vmatprep.mubr.bf16.mxu0 0
    %2385 = vmatmul.mubr.bf16.gmra.mxu0 %v2350
    %v2386 = vpop.f32.mrf.mxu0
    %v2387 = vadd.f32 %v2252, %v2386
    %v2388 = vpop.f32.mrf.mxu0
    %v2389 = vadd.f32 %v2256, %v2388
    %v2390 = vpop.f32.mrf.mxu0
    %v2391 = vpop.f32.mrf.mxu0
    %2392 = vdwg.mxu0
    %2393 = vmatprep.subr.bf16.mxu0 0
    %2394 = vmatpush1.bf16.msra.mxu0 0
    %2395 = vmatprep.subr.bf16.mxu0 0
    %2396 = vmatpush1.bf16.msra.mxu0 0
    %2397 = vmatprep.subr.bf16.mxu0 0
    %2398 = vmatpush1.bf16.msra.mxu0 0
    %2399 = vmatprep.subr.bf16.mxu0 0
    %2400 = vmatpush1.bf16.msra.mxu0 0
    %2401 = vmatprep.subr.bf16.mxu0 %v2332
    %2402 = vmatpush1.bf16.msra.mxu0 %v2331
    %2403 = vmatprep.subr.bf16.mxu0 %v2328
    %2404 = vmatpush1.bf16.msra.mxu0 %v2327
    %2405 = vmatprep.subr.bf16.mxu0 %v2324
    %2406 = vmatpush1.bf16.msra.mxu0 %v2323
    %2407 = vmatprep.subr.bf16.mxu0 %v2320
    %2408 = vmatpush1.bf16.msra.mxu0 %v2319
    %2409 = vmatprep.subr.bf16.mxu0 0
    %2410 = vmatpush2.bf16.msra.mxu0 0
    %2411 = vmatprep.subr.bf16.mxu0 0
    %2412 = vmatpush2.bf16.msra.mxu0 0
    %2413 = vmatprep.subr.bf16.mxu0 0
    %2414 = vmatpush2.bf16.msra.mxu0 0
    %2415 = vmatprep.subr.bf16.mxu0 0
    %2416 = vmatpush2.bf16.msra.mxu0 0
    %2417 = vmatprep.subr.bf16.mxu0 0
    %2418 = vmatpush2.bf16.msra.mxu0 0
    %2419 = vmatprep.subr.bf16.mxu0 0
    %2420 = vmatpush2.bf16.msra.mxu0 0
    %2421 = vmatprep.subr.bf16.mxu0 0
    %2422 = vmatpush2.bf16.msra.mxu0 0
    %2423 = vmatprep.subr.bf16.mxu0 0
    %2424 = vmatpush2.bf16.msra.mxu0 0
    %2425 = vmatprep.mubr.bf16.mxu0 0
    %2426 = vmatmul.mubr.bf16.gmra.mxu0 %v2350
    %v2427 = vpop.f32.mrf.mxu0
    %v2428 = vadd.f32 %v2260, %v2427
    %v2429 = vpop.f32.mrf.mxu0
    %v2430 = vadd.f32 %v2264, %v2429
    %v2431 = vpop.f32.mrf.mxu0
    %v2432 = vpop.f32.mrf.mxu0
    %2433 = vdwg.mxu0
    %v2434 = vmax.f32 %v2387, 0.0
    %v2435 = vmax.f32 %v2389, 0.0
    %v2436 = vmax.f32 %v2428, 0.0
    %v2437 = vmax.f32 %v2430, 0.0
    %v2438 = vpack.c.bf16 %v2434, %v2434
    %v2439 = vpack.c.bf16 %v2435, %v2435
    %v2440 = vpack.c.bf16 %v2436, %v2436
    %v2441 = vpack.c.bf16 %v2437, %v2437
    %v2442 = vld [vmem:[%s5] sm:$0xf]
    %v2443 = vld [vmem:[%s5 + $0x4] sm:$0xf]
    %v2444 = vld [vmem:[%s5 + $0x8] sm:$0xf]
    %v2445 = vld [vmem:[%s5 + $0xc] sm:$0xf]
    %v2446 = vld [vmem:[%s5 + $0x10] sm:$0xf]
    %v2447 = vld [vmem:[%s5 + $0x14] sm:$0xf]
    %v2448 = vld [vmem:[%s5 + $0x18] sm:$0xf]
    %v2449 = vld [vmem:[%s5 + $0x1c] sm:$0xf]
    %v2450 = vld [vmem:[%s5 + $0x20] sm:$0xf]
    %v2451 = vld [vmem:[%s5 + $0x24] sm:$0xf]
    %v2452 = vld [vmem:[%s5 + $0x28] sm:$0xf]
    %v2453 = vld [vmem:[%s5 + $0x2c] sm:$0xf]
    %v2454 = vld [vmem:[%s5 + $0x30] sm:$0xf]
    %v2455 = vld [vmem:[%s5 + $0x34] sm:$0xf]
    %v2456 = vld [vmem:[%s5 + $0x38] sm:$0xf]
    %v2457 = vld [vmem:[%s5 + $0x3c] sm:$0xf]
    %v2458 = vld [vmem:[%s5 + $0x40] sm:$0xf]
    %v2459 = vld [vmem:[%s5 + $0x44] sm:$0xf]
    %v2460 = vld [vmem:[%s5 + $0x48] sm:$0xf]
    %v2461 = vld [vmem:[%s5 + $0x4c] sm:$0xf]
    %v2462 = vld [vmem:[%s5 + $0x50] sm:$0xf]
    %v2463 = vld [vmem:[%s5 + $0x54] sm:$0xf]
    %v2464 = vld [vmem:[%s5 + $0x58] sm:$0xf]
    %v2465 = vld [vmem:[%s5 + $0x5c] sm:$0xf]
    %v2466 = vld [vmem:[%s5 + $0x60] sm:$0xf]
    %v2467 = vld [vmem:[%s5 + $0x64] sm:$0xf]
    %v2468 = vld [vmem:[%s5 + $0x68] sm:$0xf]
    %v2469 = vld [vmem:[%s5 + $0x6c] sm:$0xf]
    %v2470 = vld [vmem:[%s5 + $0x70] sm:$0xf]
    %v2471 = vld [vmem:[%s5 + $0x74] sm:$0xf]
    %v2472 = vld [vmem:[%s5 + $0x78] sm:$0xf]
    %v2473 = vld [vmem:[%s5 + $0x7c] sm:$0xf]
    %v2474 = vld [vmem:[%s5 + $0x80] sm:$0xf]
    %v2475 = vld [vmem:[%s5 + $0x84] sm:$0xf]
    %v2476 = vld [vmem:[%s5 + $0x88] sm:$0xf]
    %v2477 = vld [vmem:[%s5 + $0x8c] sm:$0xf]
    %v2478 = vld [vmem:[%s5 + $0x90] sm:$0xf]
    %v2479 = vld [vmem:[%s5 + $0x94] sm:$0xf]
    %v2480 = vld [vmem:[%s5 + $0x98] sm:$0xf]
    %v2481 = vld [vmem:[%s5 + $0x9c] sm:$0xf]
    %v2482 = vld [vmem:[%s5 + $0xa0] sm:$0xf]
    %v2483 = vld [vmem:[%s5 + $0xa4] sm:$0xf]
    %v2484 = vld [vmem:[%s5 + $0xa8] sm:$0xf]
    %v2485 = vld [vmem:[%s5 + $0xac] sm:$0xf]
    %v2486 = vld [vmem:[%s5 + $0xb0] sm:$0xf]
    %v2487 = vld [vmem:[%s5 + $0xb4] sm:$0xf]
    %v2488 = vld [vmem:[%s5 + $0xb8] sm:$0xf]
    %v2489 = vld [vmem:[%s5 + $0xbc] sm:$0xf]
    %v2490 = vld [vmem:[%s5 + $0xc0] sm:$0xf]
    %v2491 = vld [vmem:[%s5 + $0xc4] sm:$0xf]
    %v2492 = vld [vmem:[%s5 + $0xc8] sm:$0xf]
    %v2493 = vld [vmem:[%s5 + $0xcc] sm:$0xf]
    %v2494 = vld [vmem:[%s5 + $0xd0] sm:$0xf]
    %v2495 = vld [vmem:[%s5 + $0xd4] sm:$0xf]
    %v2496 = vld [vmem:[%s5 + $0xd8] sm:$0xf]
    %v2497 = vld [vmem:[%s5 + $0xdc] sm:$0xf]
    %v2498 = vld [vmem:[%s5 + $0xe0] sm:$0xf]
    %v2499 = vld [vmem:[%s5 + $0xe4] sm:$0xf]
    %v2500 = vld [vmem:[%s5 + $0xe8] sm:$0xf]
    %v2501 = vld [vmem:[%s5 + $0xec] sm:$0xf]
    %v2502 = vld [vmem:[%s5 + $0xf0] sm:$0xf]
    %v2503 = vld [vmem:[%s5 + $0xf4] sm:$0xf]
    %v2504 = vld [vmem:[%s5 + $0xf8] sm:$0xf]
    %v2505 = vld [vmem:[%s5 + $0xfc] sm:$0xf]
    %v2570 = vunpack.c.l.b16 %v2442
    %v2571 = vunpack.c.l.b16 %v2443
    %v2572 = vunpack.c.l.b16 %v2444
    %v2573 = vunpack.c.l.b16 %v2445
    %v2574 = vunpack.c.l.b16 %v2446
    %v2575 = vunpack.c.l.b16 %v2447
    %v2576 = vunpack.c.l.b16 %v2448
    %v2577 = vunpack.c.l.b16 %v2449
    %v2578 = vunpack.c.l.b16 %v2450
    %v2579 = vunpack.c.l.b16 %v2451
    %v2580 = vunpack.c.l.b16 %v2452
    %v2581 = vunpack.c.l.b16 %v2453
    %v2582 = vunpack.c.l.b16 %v2454
    %v2583 = vunpack.c.l.b16 %v2455
    %v2584 = vunpack.c.l.b16 %v2456
    %v2585 = vunpack.c.l.b16 %v2457
    %v2586 = vunpack.c.l.b16 %v2458
    %v2587 = vunpack.c.l.b16 %v2459
    %v2588 = vunpack.c.l.b16 %v2460
    %v2589 = vunpack.c.l.b16 %v2461
    %v2590 = vunpack.c.l.b16 %v2462
    %v2591 = vunpack.c.l.b16 %v2463
    %v2592 = vunpack.c.l.b16 %v2464
    %v2593 = vunpack.c.l.b16 %v2465
    %v2594 = vunpack.c.l.b16 %v2466
    %v2595 = vunpack.c.l.b16 %v2467
    %v2596 = vunpack.c.l.b16 %v2468
    %v2597 = vunpack.c.l.b16 %v2469
    %v2598 = vunpack.c.l.b16 %v2470
    %v2599 = vunpack.c.l.b16 %v2471
    %v2600 = vunpack.c.l.b16 %v2472
    %v2601 = vunpack.c.l.b16 %v2473
    %v2602 = vunpack.c.l.b16 %v2474
    %v2603 = vunpack.c.l.b16 %v2475
    %v2604 = vunpack.c.l.b16 %v2476
    %v2605 = vunpack.c.l.b16 %v2477
    %v2606 = vunpack.c.l.b16 %v2478
    %v2607 = vunpack.c.l.b16 %v2479
    %v2608 = vunpack.c.l.b16 %v2480
    %v2609 = vunpack.c.l.b16 %v2481
    %v2610 = vunpack.c.l.b16 %v2482
    %v2611 = vunpack.c.l.b16 %v2483
    %v2612 = vunpack.c.l.b16 %v2484
    %v2613 = vunpack.c.l.b16 %v2485
    %v2614 = vunpack.c.l.b16 %v2486
    %v2615 = vunpack.c.l.b16 %v2487
    %v2616 = vunpack.c.l.b16 %v2488
    %v2617 = vunpack.c.l.b16 %v2489
    %v2618 = vunpack.c.l.b16 %v2490
    %v2619 = vunpack.c.l.b16 %v2491
    %v2620 = vunpack.c.l.b16 %v2492
    %v2621 = vunpack.c.l.b16 %v2493
    %v2622 = vunpack.c.l.b16 %v2494
    %v2623 = vunpack.c.l.b16 %v2495
    %v2624 = vunpack.c.l.b16 %v2496
    %v2625 = vunpack.c.l.b16 %v2497
    %v2626 = vunpack.c.l.b16 %v2498
    %v2627 = vunpack.c.l.b16 %v2499
    %v2628 = vunpack.c.l.b16 %v2500
    %v2629 = vunpack.c.l.b16 %v2501
    %v2630 = vunpack.c.l.b16 %v2502
    %v2631 = vunpack.c.l.b16 %v2503
    %v2632 = vunpack.c.l.b16 %v2504
    %v2633 = vunpack.c.l.b16 %v2505
    %v2634 = vpack.c.b16 %v2571, %v2570
    %v2635 = vpack.c.b16 %v2573, %v2572
    %v2636 = vpack.c.b16 %v2575, %v2574
    %v2637 = vpack.c.b16 %v2577, %v2576
    %v2638 = vpack.c.b16 %v2579, %v2578
    %v2639 = vpack.c.b16 %v2581, %v2580
    %v2640 = vpack.c.b16 %v2583, %v2582
    %v2641 = vpack.c.b16 %v2585, %v2584
    %v2642 = vpack.c.b16 %v2587, %v2586
    %v2643 = vpack.c.b16 %v2589, %v2588
    %v2644 = vpack.c.b16 %v2591, %v2590
    %v2645 = vpack.c.b16 %v2593, %v2592
    %v2646 = vpack.c.b16 %v2595, %v2594
    %v2647 = vpack.c.b16 %v2597, %v2596
    %v2648 = vpack.c.b16 %v2599, %v2598
    %v2649 = vpack.c.b16 %v2601, %v2600
    %v2650 = vpack.c.b16 %v2603, %v2602
    %v2651 = vpack.c.b16 %v2605, %v2604
    %v2652 = vpack.c.b16 %v2607, %v2606
    %v2653 = vpack.c.b16 %v2609, %v2608
    %v2654 = vpack.c.b16 %v2611, %v2610
    %v2655 = vpack.c.b16 %v2613, %v2612
    %v2656 = vpack.c.b16 %v2615, %v2614
    %v2657 = vpack.c.b16 %v2617, %v2616
    %v2658 = vpack.c.b16 %v2619, %v2618
    %v2659 = vpack.c.b16 %v2621, %v2620
    %v2660 = vpack.c.b16 %v2623, %v2622
    %v2661 = vpack.c.b16 %v2625, %v2624
    %v2662 = vpack.c.b16 %v2627, %v2626
    %v2663 = vpack.c.b16 %v2629, %v2628
    %v2664 = vpack.c.b16 %v2631, %v2630
    %v2665 = vpack.c.b16 %v2633, %v2632
    %2698 = vmatprep.subr.bf16.mxu0 0
    %2699 = vmatpush1.bf16.msra.mxu0 %v2641
    %2700 = vmatprep.subr.bf16.mxu0 0
    %2701 = vmatpush1.bf16.msra.mxu0 %v2640
    %2702 = vmatprep.subr.bf16.mxu0 0
    %2703 = vmatpush1.bf16.msra.mxu0 %v2639
    %2704 = vmatprep.subr.bf16.mxu0 0
    %2705 = vmatpush1.bf16.msra.mxu0 %v2638
    %2706 = vmatprep.subr.bf16.mxu0 0
    %2707 = vmatpush1.bf16.msra.mxu0 %v2637
    %2708 = vmatprep.subr.bf16.mxu0 0
    %2709 = vmatpush1.bf16.msra.mxu0 %v2636
    %2710 = vmatprep.subr.bf16.mxu0 0
    %2711 = vmatpush1.bf16.msra.mxu0 %v2635
    %2712 = vmatprep.subr.bf16.mxu0 0
    %2713 = vmatpush1.bf16.msra.mxu0 %v2634
    %2714 = vmatprep.subr.bf16.mxu0 0
    %2715 = vmatpush2.bf16.msra.mxu0 %v2649
    %2716 = vmatprep.subr.bf16.mxu0 0
    %2717 = vmatpush2.bf16.msra.mxu0 %v2648
    %2718 = vmatprep.subr.bf16.mxu0 0
    %2719 = vmatpush2.bf16.msra.mxu0 %v2647
    %2720 = vmatprep.subr.bf16.mxu0 0
    %2721 = vmatpush2.bf16.msra.mxu0 %v2646
    %2722 = vmatprep.subr.bf16.mxu0 0
    %2723 = vmatpush2.bf16.msra.mxu0 %v2645
    %2724 = vmatprep.subr.bf16.mxu0 0
    %2725 = vmatpush2.bf16.msra.mxu0 %v2644
    %2726 = vmatprep.subr.bf16.mxu0 0
    %2727 = vmatpush2.bf16.msra.mxu0 %v2643
    %2728 = vmatprep.subr.bf16.mxu0 0
    %2729 = vmatpush2.bf16.msra.mxu0 %v2642
    %2730 = vmatprep.mubr.bf16.mxu0 %v2439
    %2731 = vmatmul.mubr.bf16.gmra.mxu0 %v2438
    %v2732 = vpop.f32.mrf.mxu0
    %v2733 = vadd.f32 %v33, %v2732
    %v2734 = vpop.f32.mrf.mxu0
    %v2735 = vpop.f32.mrf.mxu0
    %v2736 = vpop.f32.mrf.mxu0
    %2737 = vdwg.mxu0
    %2738 = vmatprep.subr.bf16.mxu0 0
    %2739 = vmatpush1.bf16.msra.mxu0 %v2657
    %2740 = vmatprep.subr.bf16.mxu0 0
    %2741 = vmatpush1.bf16.msra.mxu0 %v2656
    %2742 = vmatprep.subr.bf16.mxu0 0
    %2743 = vmatpush1.bf16.msra.mxu0 %v2655
    %2744 = vmatprep.subr.bf16.mxu0 0
    %2745 = vmatpush1.bf16.msra.mxu0 %v2654
    %2746 = vmatprep.subr.bf16.mxu0 0
    %2747 = vmatpush1.bf16.msra.mxu0 %v2653
    %2748 = vmatprep.subr.bf16.mxu0 0
    %2749 = vmatpush1.bf16.msra.mxu0 %v2652
    %2750 = vmatprep.subr.bf16.mxu0 0
    %2751 = vmatpush1.bf16.msra.mxu0 %v2651
    %2752 = vmatprep.subr.bf16.mxu0 0
    %2753 = vmatpush1.bf16.msra.mxu0 %v2650
    %2754 = vmatprep.subr.bf16.mxu0 0
    %2755 = vmatpush2.bf16.msra.mxu0 %v2665
    %2756 = vmatprep.subr.bf16.mxu0 0
    %2757 = vmatpush2.bf16.msra.mxu0 %v2664
    %2758 = vmatprep.subr.bf16.mxu0 0
    %2759 = vmatpush2.bf16.msra.mxu0 %v2663
    %2760 = vmatprep.subr.bf16.mxu0 0
    %2761 = vmatpush2.bf16.msra.mxu0 %v2662
    %2762 = vmatprep.subr.bf16.mxu0 0
    %2763 = vmatpush2.bf16.msra.mxu0 %v2661
    %2764 = vmatprep.subr.bf16.mxu0 0
    %2765 = vmatpush2.bf16.msra.mxu0 %v2660
    %2766 = vmatprep.subr.bf16.mxu0 0
    %2767 = vmatpush2.bf16.msra.mxu0 %v2659
    %2768 = vmatprep.subr.bf16.mxu0 0
    %2769 = vmatpush2.bf16.msra.mxu0 %v2658
    %2770 = vmatprep.mubr.bf16.mxu0 %v2441
    %2771 = vmatmul.mubr.bf16.gmra.mxu0 %v2440
    %v2772 = vpop.f32.mrf.mxu0
    %v2773 = vadd.f32 %v2733, %v2772
    %v2774 = vpop.f32.mrf.mxu0
    %v2775 = vpop.f32.mrf.mxu0
    %v2776 = vpop.f32.mrf.mxu0
    %2777 = vdwg.mxu0
    %2778 = vst [vmem:[#allocation2] sm:$0x3] %v2773
    // Predicated region
    $region30: #{dqn_forward.1} parent=1 // pred_check
      _
    $region31: #{dqn_forward.1} parent=1 // pred_check_branch
      %2780 = sbr.rel (0) target = $region33
    $region32: #{dqn_forward.1} parent=1 // pred_region
      %s2782 = ssub.s32 32, 32
      %2783 = vsyncadd [#allocation3], %s2782
      %s2785 = sshll.u32 [#allocation2], 4
      %s2786 = int_to_ptr.vmem [resolvable:$true] %s2785
      %2788 = dma.vmem_to_hbm [thread:$0]  %s2786, 32, %s7, [#allocation3]
    $region33: #{dqn_forward.1} parent=1 // pred_fallthru
      _
    // Predicated region
    $region34: #{dqn_forward.1} parent=1 // pred_check
      _
    $region35: #{dqn_forward.1} parent=1 // pred_check_branch
      %2790 = sbr.rel (0) target = $region37
    $region36: #{dqn_forward.1} parent=1 // pred_region
      %2791 = dma.done [#allocation3], 32
    $region37: #{dqn_forward.1} parent=1 // pred_fallthru
      _
    %2792 = vsyncpa [#allocation3], 1

</llo_original>
